<compile_context>
chip_gen: v7x
topology: tpu7x:2x2x1
jax: 0.10.0
libtpu: 0.0.40
codegen_flags: <defaults>
</compile_context>

<pallas_src>
import jax
import jax.numpy as jnp
import numpy as np
from jax import lax
from jax.experimental import pallas as pl
from jax.experimental.pallas import tpu as pltpu

# ---------------- config (small, consistent with the module) ----------------
HIDDEN = 32          # hidden_channels
KSIZE = 3            # kernel_size
DIL_RATE = 2         # dilation_rate
N_LAYERS = 2         # n_layers
YIN_START = 2
YIN_SCOPE = 8        # in_channels == out_channels
YIN_SHIFT_RANGE = 2
B = 2
T = 16
C_BIG = 16           # channel dim of z_yin / yin_gt (>= yin_start + yin_scope + shift_range)

PAD0 = 8             # per-batch leading/trailing zero rows: 8-sublane aligned, >= max dilation pad
assert PAD0 >= (DIL_RATE ** (N_LAYERS - 1)) * (KSIZE - 1) // 2
assert T % 8 == 0


def _round8(n):
    return ((n + 7) // 8) * 8


# ------------------- single packed-parameter slab layout ---------------------
def make_layout():
    """Row layout of the single packed (rows,128) parameter slab (weights + biases)."""
    layout, r = {}, 0

    def add(name, rows, cols):
        nonlocal r
        layout[name] = (r, rows, cols)
        r += _round8(rows)                         # every entry 8-sublane aligned

    add("pre", YIN_SCOPE, HIDDEN)                  # (scope, hidden)
    for i in range(N_LAYERS):
        rs_ch = 2 * HIDDEN if i < N_LAYERS - 1 else HIDDEN
        add(f"in{i}", KSIZE * HIDDEN, 2 * HIDDEN)  # K taps stacked (K*h, 2h)
        add(f"rs{i}", HIDDEN, rs_ch)               # (h, rs_ch)
    add("proj", HIDDEN, 128)                       # (h, 128): scope cols valid
    add("b_pre", 1, HIDDEN)
    for i in range(N_LAYERS):
        rs_ch = 2 * HIDDEN if i < N_LAYERS - 1 else HIDDEN
        add(f"b_in{i}", 1, 2 * HIDDEN)
        add(f"b_rs{i}", 1, rs_ch)
    add("b_proj", 1, 128)
    return layout, _round8(r)


LAYOUT, P_ROWS = make_layout()


def pack_params(params):
    """Pack all conv weights/biases into ONE lane-dense f32 slab -> one input DMA."""
    slab = jnp.zeros((P_ROWS, 128), jnp.float32)

    def put(s, name, mat):
        r0, _, _ = LAYOUT[name]
        return s.at[r0:r0 + mat.shape[0], :mat.shape[1]].set(mat)

    slab = put(slab, "pre", params["wpre"])
    slab = put(slab, "b_pre", params["bpre"])
    for i in range(N_LAYERS):
        slab = put(slab, f"in{i}", params["w_in"][i].reshape(KSIZE * HIDDEN, 2 * HIDDEN))
        slab = put(slab, f"b_in{i}", params["b_in"][i])
        slab = put(slab, f"rs{i}", params["w_rs"][i])
        slab = put(slab, f"b_rs{i}", params["b_rs"][i])
    slab = put(slab, "proj", params["wproj"])      # cols >= scope stay zero
    slab = put(slab, "b_proj", params["bproj"])
    return slab


# ---------------------------- Pallas kernel ----------------------------------
def make_kernel(b_n, t_len):
    seg = t_len + 2 * PAD0              # 32 rows per batch: 8-aligned offsets everywhere
    rows = b_n * seg
    hidden, ksize, scope = HIDDEN, KSIZE, YIN_SCOPE

    def kernel(len_ref, z_ref, p_ref, yhat_ref):
        def psl(name):
            r0, nr, nc = LAYOUT[name]
            return p_ref[r0:r0 + nr, 0:nc]

        # ---- per-row validity mask from scalar-prefetched lengths (SMEM) --------
        t_io = lax.broadcasted_iota(jnp.int32, (seg, 1), 0)
        mparts = []
        for b in range(b_n):
            valid = jnp.logical_and(t_io >= PAD0, t_io < PAD0 + len_ref[b])
            mparts.append(valid.astype(jnp.float32))
        mrows = jnp.concatenate(mparts, axis=0)                 # (rows, 1), aligned blocks
        # hoisted mask broadcasts (JAX does not CSE broadcast_in_dim)
        m_h = jnp.broadcast_to(mrows, (rows, hidden))
        m_out = jnp.broadcast_to(mrows, (rows, 128))

        # ---- 8-aligned padded row stack of the time-major cropped input ---------
        zpad_s = jnp.zeros((PAD0, scope), jnp.float32)
        zparts = []
        for b in range(b_n):
            zparts += [zpad_s, z_ref[b], zpad_s]                # all offsets % 8 == 0
        zrows = jnp.concatenate(zparts, axis=0)                 # (rows, scope)

        # ---- pre 1x1 conv over channels: single M=rows matmul; mask zeros pad rows
        x = (jnp.dot(zrows, psl("pre"), preferred_element_type=jnp.float32)
             + psl("b_pre")) * m_h

        output = jnp.zeros((rows, hidden), jnp.float32)
        zpad_h = jnp.zeros((PAD0, hidden), jnp.float32)

        # ---- WN stack: K accumulating K=32 matmuls per layer (no tap lane-concat)
        for i in range(N_LAYERS):
            d = DIL_RATE ** i
            pad = d * (ksize - 1) // 2
            # zero-extended, register-resident stack; 8-aligned placement of x
            xe = jnp.concatenate([zpad_h, x, zpad_h], axis=0)   # (rows + 16, hidden)
            r0, _, _ = LAYOUT[f"in{i}"]
            acc = psl(f"b_in{i}")                               # (1, 2h) broadcasts once
            for k in range(ksize):
                off = PAD0 + k * d - pad                        # center tap stays aligned
                tap = x if off == PAD0 else xe[off:off + rows, :]
                wk = p_ref[r0 + k * hidden:r0 + (k + 1) * hidden, 0:2 * hidden]
                acc = acc + jnp.dot(tap, wk, preferred_element_type=jnp.float32)
            # fused_add_tanh_sigmoid_multiply (g term == 0 since gin_channels=0)
            acts = jnp.tanh(acc[:, :hidden]) * jax.nn.sigmoid(acc[:, hidden:])
            rs = jnp.dot(acts, psl(f"rs{i}"),
                         preferred_element_type=jnp.float32) + psl(f"b_rs{i}")
            if i < N_LAYERS - 1:
                x = (x + rs[:, :hidden]) * m_h                  # mask re-zeros pad rows
                output = output + rs[:, hidden:]
            else:
                output = output + rs

        # ---- proj 1x1 straight into 128 output lanes; aligned unmasked stores ----
        y = (jnp.dot(output * m_h, psl("proj"),
                     preferred_element_type=jnp.float32) + psl("b_proj")) * m_out
        for b in range(b_n):
            r0 = b * seg + PAD0                                 # 8, 40 -> % 8 == 0
            yhat_ref[b] = y[r0:r0 + t_len, :]                   # (T, 128), lane-dense

    return kernel


def pallas_decoder(lengths, zc_t, pslab):
    b, t_len, scope = zc_t.shape
    kernel = make_kernel(b, t_len)

    grid_spec = pltpu.PrefetchScalarGridSpec(
        num_scalar_prefetch=1,                                  # per-batch valid lengths
        grid=(1,),
        in_specs=[
            pl.BlockSpec((b, t_len, scope), lambda i, L: (0, 0, 0)),   # cropped input
            pl.BlockSpec((P_ROWS, 128), lambda i, L: (0, 0)),          # packed params
        ],
        out_specs=pl.BlockSpec((b, t_len, 128), lambda i, L: (0, 0, 0)),
    )
    return pl.pallas_call(
        kernel,
        grid_spec=grid_spec,
        out_shape=jax.ShapeDtypeStruct((b, t_len, 128), jnp.float32),
        compiler_params=pltpu.CompilerParams(dimension_semantics=("arbitrary",)),
    )(lengths, zc_t, pslab)


# --------------------------- glue (plain JAX) ---------------------------------
def crop_scope(x, yin_start, scope_shift):
    """x: (B, C_big, T); scope_shift: (B,) int32 -> (B, yin_scope, T)."""
    def crop_one(xi, s):
        return lax.dynamic_slice(xi, (yin_start + s, 0), (YIN_SCOPE, xi.shape[1]))
    return jax.vmap(crop_one)(x, scope_shift)


@jax.jit
def ying_decoder_forward(pslab, z_yin, yin_gt, z_mask, scope_shift):
    # pure data-movement module outputs (do not touch the network)
    z_yin_crop = crop_scope(z_yin, YIN_START, scope_shift)
    yin_gt_shifted_crop = crop_scope(yin_gt, YIN_START, scope_shift)
    yin_gt_crop = crop_scope(yin_gt, YIN_START, jnp.zeros_like(scope_shift))

    # scalar side-channel: per-batch valid lengths instead of a (B,T,1) mask DMA
    lengths = jnp.sum(z_mask, axis=(1, 2)).astype(jnp.int32)

    zc_t = jnp.transpose(z_yin_crop, (0, 2, 1))                 # (B, T, scope), layout plumbing
    yhat_pad = pallas_decoder(lengths, zc_t, pslab)             # (B, T, 128)
    yin_hat_crop = jnp.transpose(yhat_pad[:, :, :YIN_SCOPE], (0, 2, 1))   # (B, scope, T)
    return yin_gt_crop, yin_gt_shifted_crop, yin_hat_crop, z_yin_crop, scope_shift


# --------------------------- pure-JAX reference --------------------------------
def ref_decoder(zc_t, mask_t, params):
    """Reference of pre -> WN -> proj in (B, T, C) layout for validation."""
    hidden = HIDDEN
    x = (zc_t @ params["wpre"] + params["bpre"]) * mask_t
    out = jnp.zeros_like(x)
    for i in range(N_LAYERS):
        d = DIL_RATE ** i
        pad = d * (KSIZE - 1) // 2
        xp = jnp.pad(x, ((0, 0), (pad, pad), (0, 0)))
        acc = jnp.zeros(x.shape[:2] + (2 * hidden,), jnp.float32) + params["b_in"][i]
        for k in range(KSIZE):
            acc = acc + xp[:, k * d:k * d + x.shape[1], :] @ params["w_in"][i][k]
        acts = jnp.tanh(acc[..., :hidden]) * jax.nn.sigmoid(acc[..., hidden:])
        rs = acts @ params["w_rs"][i] + params["b_rs"][i]
        if i < N_LAYERS - 1:
            x = (x + rs[..., :hidden]) * mask_t
            out = out + rs[..., hidden:]
        else:
            out = out + rs
    x = out * mask_t
    return (x @ params["wproj"] + params["bproj"]) * mask_t


def init_params(key):
    ks = jax.random.split(key, 4 + 4 * N_LAYERS)
    p = {
        "wpre": 0.1 * jax.random.normal(ks[0], (YIN_SCOPE, HIDDEN), jnp.float32),
        "bpre": 0.1 * jax.random.normal(ks[1], (1, HIDDEN), jnp.float32),
        "wproj": 0.1 * jax.random.normal(ks[2], (HIDDEN, YIN_SCOPE), jnp.float32),
        "bproj": 0.1 * jax.random.normal(ks[3], (1, YIN_SCOPE), jnp.float32),
        "w_in": [], "b_in": [], "w_rs": [], "b_rs": [],
    }
    for i in range(N_LAYERS):
        rs_ch = 2 * HIDDEN if i < N_LAYERS - 1 else HIDDEN
        kk = ks[4 + 4 * i:8 + 4 * i]
        p["w_in"].append(0.1 * jax.random.normal(kk[0], (KSIZE, HIDDEN, 2 * HIDDEN), jnp.float32))
        p["b_in"].append(0.1 * jax.random.normal(kk[1], (1, 2 * HIDDEN), jnp.float32))
        p["w_rs"].append(0.1 * jax.random.normal(kk[2], (HIDDEN, rs_ch), jnp.float32))
        p["b_rs"].append(0.1 * jax.random.normal(kk[3], (1, rs_ch), jnp.float32))
    return p


if __name__ == "__main__":
    key = jax.random.PRNGKey(0)
    k_p, k_z, k_gt, k_shift = jax.random.split(key, 4)

    params = init_params(k_p)
    pslab = pack_params(params)

    z_yin = jax.random.normal(k_z, (B, C_BIG, T), jnp.float32)
    yin_gt = jax.random.normal(k_gt, (B, C_BIG, T), jnp.float32)
    # mask: ones, with the tail of batch 1 masked out to exercise masking
    z_mask = jnp.ones((B, 1, T), jnp.float32).at[1, 0, -3:].set(0.0)
    # deterministic stand-in for torch.randint(-r, r, (B,))
    scope_shift = jax.random.randint(k_shift, (B,), -YIN_SHIFT_RANGE, YIN_SHIFT_RANGE,
                                     dtype=jnp.int32)

    outs = ying_decoder_forward(pslab, z_yin, yin_gt, z_mask, scope_shift)
    outs = jax.block_until_ready(outs)
    yin_gt_crop, yin_gt_shifted_crop, yin_hat_crop, z_yin_crop, shift_out = outs

    # validate the crop (pure data movement -> exact)
    shifts_np = np.asarray(scope_shift)
    ref_crop = np.stack([np.asarray(z_yin)[i, YIN_START + shifts_np[i]:
                                           YIN_START + shifts_np[i] + YIN_SCOPE, :]
                         for i in range(B)])
    np.testing.assert_array_equal(np.asarray(z_yin_crop), ref_crop)

    # validate the fused Pallas decoder against the pure-JAX reference
    zc_t = jnp.transpose(jnp.asarray(ref_crop), (0, 2, 1))
    mask_t = jnp.reshape(z_mask, (B, T, 1))
    ref = jnp.transpose(ref_decoder(zc_t, mask_t, params), (0, 2, 1))
    np.testing.assert_allclose(np.asarray(yin_hat_crop), np.asarray(ref),
                               rtol=1e-5, atol=1e-5)

    assert yin_hat_crop.shape == (B, YIN_SCOPE, T)
    assert yin_gt_crop.shape == (B, YIN_SCOPE, T)
    assert yin_gt_shifted_crop.shape == (B, YIN_SCOPE, T)
    print("KERNEL_OK")
</pallas_src>

<mosaic_0001>
module attributes {stable_mosaic.version = 11 : i64} {
  func.func @kernel(%arg0: i32, %arg1: memref<2xi32, #tpu.memory_space<smem>>, %arg2: memref<2x16x8xf32, #tpu.memory_space<vmem>>, %arg3: memref<344x128xf32, #tpu.memory_space<vmem>>, %arg4: memref<2x16x128xf32, #tpu.memory_space<vmem>>) attributes {dimension_semantics = [#tpu.dimension_semantics<arbitrary>], iteration_bounds = array<i64: 1>, scalar_prefetch = 1 : i64, scratch_operands = 0 : i64, tpu.core_type = #tpu.core_type<tc>, window_params = [{pipeline_mode = #tpu.pipeline_mode<synchronous>, transform_indices = @transform_0, window_bounds = array<i64: 2, 16, 8>}, {pipeline_mode = #tpu.pipeline_mode<synchronous>, transform_indices = @transform_1, window_bounds = array<i64: 344, 128>}, {pipeline_mode = #tpu.pipeline_mode<synchronous>, transform_indices = @transform_2, window_bounds = array<i64: 2, 16, 128>}]} {
    %0 = tpu.iota {dimensions = array<i32: 0>} : vector<32x1xi32>
    %c8_i32 = arith.constant 8 : i32
    %1 = vector.broadcast %c8_i32 : i32 to vector<32x1xi32>
    %2 = arith.cmpi sge, %0, %1 : vector<32x1xi32>
    %c0 = arith.constant 0 : index
    %3 = memref.load %arg1[%c0] : memref<2xi32, #tpu.memory_space<smem>>
    %c8_i32_0 = arith.constant 8 : i32
    %4 = arith.addi %c8_i32_0, %3 : i32
    %5 = vector.broadcast %4 : i32 to vector<32x1xi32>
    %6 = arith.cmpi slt, %0, %5 : vector<32x1xi32>
    %7 = arith.andi %2, %6 : vector<32x1xi1>
    %8 = arith.extui %7 : vector<32x1xi1> to vector<32x1xi32>
    %9 = arith.sitofp %8 : vector<32x1xi32> to vector<32x1xf32>
    %c8_i32_1 = arith.constant 8 : i32
    %10 = vector.broadcast %c8_i32_1 : i32 to vector<32x1xi32>
    %11 = arith.cmpi sge, %0, %10 : vector<32x1xi32>
    %c1 = arith.constant 1 : index
    %12 = memref.load %arg1[%c1] : memref<2xi32, #tpu.memory_space<smem>>
    %c8_i32_2 = arith.constant 8 : i32
    %13 = arith.addi %c8_i32_2, %12 : i32
    %14 = vector.broadcast %13 : i32 to vector<32x1xi32>
    %15 = arith.cmpi slt, %0, %14 : vector<32x1xi32>
    %16 = arith.andi %11, %15 : vector<32x1xi1>
    %17 = arith.extui %16 : vector<32x1xi1> to vector<32x1xi32>
    %18 = arith.sitofp %17 : vector<32x1xi32> to vector<32x1xf32>
    %19 = tpu.concatenate %9, %18 in 0 : vector<32x1xf32>, vector<32x1xf32> -> vector<64x1xf32>
    %20 = vector.shape_cast %19 : vector<64x1xf32> to vector<64x1xf32>
    %21 = vector.broadcast %20 : vector<64x1xf32> to vector<64x32xf32>
    %22 = vector.shape_cast %19 : vector<64x1xf32> to vector<64x1xf32>
    %23 = vector.broadcast %22 : vector<64x1xf32> to vector<64x128xf32>
    %cst = arith.constant 0.000000e+00 : f32
    %24 = vector.broadcast %cst : f32 to vector<8x8xf32>
    %c0_3 = arith.constant 0 : index
    %c0_4 = arith.constant 0 : index
    %c0_5 = arith.constant 0 : index
    %25 = vector.load %arg2[%c0_3, %c0_4, %c0_5] : memref<2x16x8xf32, #tpu.memory_space<vmem>>, vector<1x16x8xf32>
    %26 = vector.shape_cast %25 : vector<1x16x8xf32> to vector<16x8xf32>
    %c1_6 = arith.constant 1 : index
    %c0_7 = arith.constant 0 : index
    %c0_8 = arith.constant 0 : index
    %27 = vector.load %arg2[%c1_6, %c0_7, %c0_8] : memref<2x16x8xf32, #tpu.memory_space<vmem>>, vector<1x16x8xf32>
    %28 = vector.shape_cast %27 : vector<1x16x8xf32> to vector<16x8xf32>
    %29 = tpu.concatenate %24, %26, %24, %24, %28, %24 in 0 : vector<8x8xf32>, vector<16x8xf32>, vector<8x8xf32>, vector<8x8xf32>, vector<16x8xf32>, vector<8x8xf32> -> vector<64x8xf32>
    %c0_9 = arith.constant 0 : index
    %c0_10 = arith.constant 0 : index
    %30 = vector.load %arg3[%c0_9, %c0_10] : memref<344x128xf32, #tpu.memory_space<vmem>>, vector<8x32xf32>
    %cst_11 = arith.constant dense<0.000000e+00> : vector<64x32xf32>
    %31 = tpu.matmul %29, %30, %cst_11 {dimension_numbers = #tpu.dot_dimension_numbers<[1], [0], [0], [1], [0, 0, 1, 1], [], []>} : vector<64x8xf32>, vector<8x32xf32>, vector<64x32xf32> -> vector<64x32xf32>
    %c296 = arith.constant 296 : index
    %c0_12 = arith.constant 0 : index
    %32 = vector.load %arg3[%c296, %c0_12] : memref<344x128xf32, #tpu.memory_space<vmem>>, vector<1x32xf32>
    %33 = vector.broadcast %32 : vector<1x32xf32> to vector<64x32xf32>
    %34 = arith.addf %31, %33 : vector<64x32xf32>
    %35 = arith.mulf %34, %21 : vector<64x32xf32>
    %cst_13 = arith.constant 0.000000e+00 : f32
    %36 = vector.broadcast %cst_13 : f32 to vector<64x32xf32>
    %cst_14 = arith.constant 0.000000e+00 : f32
    %37 = vector.broadcast %cst_14 : f32 to vector<8x32xf32>
    %38 = tpu.concatenate %37, %35, %37 in 0 : vector<8x32xf32>, vector<64x32xf32>, vector<8x32xf32> -> vector<80x32xf32>
    %c304 = arith.constant 304 : index
    %c0_15 = arith.constant 0 : index
    %39 = vector.load %arg3[%c304, %c0_15] : memref<344x128xf32, #tpu.memory_space<vmem>>, vector<1x64xf32>
    %40 = vector.extract_strided_slice %38 {offsets = [7, 0], sizes = [64, 32], strides = [1, 1]} : vector<80x32xf32> to vector<64x32xf32>
    %c8 = arith.constant 8 : index
    %c0_16 = arith.constant 0 : index
    %41 = vector.load %arg3[%c8, %c0_16] : memref<344x128xf32, #tpu.memory_space<vmem>>, vector<32x64xf32>
    %cst_17 = arith.constant dense<0.000000e+00> : vector<64x64xf32>
    %42 = tpu.matmul %40, %41, %cst_17 {dimension_numbers = #tpu.dot_dimension_numbers<[1], [0], [0], [1], [0, 0, 1, 1], [], []>} : vector<64x32xf32>, vector<32x64xf32>, vector<64x64xf32> -> vector<64x64xf32>
    %43 = vector.broadcast %39 : vector<1x64xf32> to vector<64x64xf32>
    %44 = arith.addf %43, %42 : vector<64x64xf32>
    %c40 = arith.constant 40 : index
    %c0_18 = arith.constant 0 : index
    %45 = vector.load %arg3[%c40, %c0_18] : memref<344x128xf32, #tpu.memory_space<vmem>>, vector<32x64xf32>
    %cst_19 = arith.constant dense<0.000000e+00> : vector<64x64xf32>
    %46 = tpu.matmul %35, %45, %cst_19 {dimension_numbers = #tpu.dot_dimension_numbers<[1], [0], [0], [1], [0, 0, 1, 1], [], []>} : vector<64x32xf32>, vector<32x64xf32>, vector<64x64xf32> -> vector<64x64xf32>
    %47 = arith.addf %44, %46 : vector<64x64xf32>
    %48 = vector.extract_strided_slice %38 {offsets = [9, 0], sizes = [64, 32], strides = [1, 1]} : vector<80x32xf32> to vector<64x32xf32>
    %c72 = arith.constant 72 : index
    %c0_20 = arith.constant 0 : index
    %49 = vector.load %arg3[%c72, %c0_20] : memref<344x128xf32, #tpu.memory_space<vmem>>, vector<32x64xf32>
    %cst_21 = arith.constant dense<0.000000e+00> : vector<64x64xf32>
    %50 = tpu.matmul %48, %49, %cst_21 {dimension_numbers = #tpu.dot_dimension_numbers<[1], [0], [0], [1], [0, 0, 1, 1], [], []>} : vector<64x32xf32>, vector<32x64xf32>, vector<64x64xf32> -> vector<64x64xf32>
    %51 = arith.addf %47, %50 : vector<64x64xf32>
    %52 = vector.extract_strided_slice %51 {offsets = [0, 0], sizes = [64, 32], strides = [1, 1]} : vector<64x64xf32> to vector<64x32xf32>
    %53 = math.tanh %52 : vector<64x32xf32>
    %54 = vector.extract_strided_slice %51 {offsets = [0, 32], sizes = [64, 32], strides = [1, 1]} : vector<64x64xf32> to vector<64x32xf32>
    %55 = arith.negf %54 : vector<64x32xf32>
    %56 = math.exp %55 : vector<64x32xf32>
    %cst_22 = arith.constant 1.000000e+00 : f32
    %57 = vector.broadcast %cst_22 : f32 to vector<64x32xf32>
    %58 = arith.addf %57, %56 : vector<64x32xf32>
    %59 = arith.divf %57, %58 : vector<64x32xf32>
    %60 = arith.mulf %53, %59 : vector<64x32xf32>
    %c104 = arith.constant 104 : index
    %c0_23 = arith.constant 0 : index
    %61 = vector.load %arg3[%c104, %c0_23] : memref<344x128xf32, #tpu.memory_space<vmem>>, vector<32x64xf32>
    %cst_24 = arith.constant dense<0.000000e+00> : vector<64x64xf32>
    %62 = tpu.matmul %60, %61, %cst_24 {dimension_numbers = #tpu.dot_dimension_numbers<[1], [0], [0], [1], [0, 0, 1, 1], [], []>} : vector<64x32xf32>, vector<32x64xf32>, vector<64x64xf32> -> vector<64x64xf32>
    %c312 = arith.constant 312 : index
    %c0_25 = arith.constant 0 : index
    %63 = vector.load %arg3[%c312, %c0_25] : memref<344x128xf32, #tpu.memory_space<vmem>>, vector<1x64xf32>
    %64 = vector.broadcast %63 : vector<1x64xf32> to vector<64x64xf32>
    %65 = arith.addf %62, %64 : vector<64x64xf32>
    %66 = vector.extract_strided_slice %65 {offsets = [0, 0], sizes = [64, 32], strides = [1, 1]} : vector<64x64xf32> to vector<64x32xf32>
    %67 = arith.addf %35, %66 : vector<64x32xf32>
    %68 = arith.mulf %67, %21 : vector<64x32xf32>
    %69 = vector.extract_strided_slice %65 {offsets = [0, 32], sizes = [64, 32], strides = [1, 1]} : vector<64x64xf32> to vector<64x32xf32>
    %70 = arith.addf %36, %69 : vector<64x32xf32>
    %71 = tpu.concatenate %37, %68, %37 in 0 : vector<8x32xf32>, vector<64x32xf32>, vector<8x32xf32> -> vector<80x32xf32>
    %c320 = arith.constant 320 : index
    %c0_26 = arith.constant 0 : index
    %72 = vector.load %arg3[%c320, %c0_26] : memref<344x128xf32, #tpu.memory_space<vmem>>, vector<1x64xf32>
    %73 = vector.extract_strided_slice %71 {offsets = [6, 0], sizes = [64, 32], strides = [1, 1]} : vector<80x32xf32> to vector<64x32xf32>
    %c136 = arith.constant 136 : index
    %c0_27 = arith.constant 0 : index
    %74 = vector.load %arg3[%c136, %c0_27] : memref<344x128xf32, #tpu.memory_space<vmem>>, vector<32x64xf32>
    %cst_28 = arith.constant dense<0.000000e+00> : vector<64x64xf32>
    %75 = tpu.matmul %73, %74, %cst_28 {dimension_numbers = #tpu.dot_dimension_numbers<[1], [0], [0], [1], [0, 0, 1, 1], [], []>} : vector<64x32xf32>, vector<32x64xf32>, vector<64x64xf32> -> vector<64x64xf32>
    %76 = vector.broadcast %72 : vector<1x64xf32> to vector<64x64xf32>
    %77 = arith.addf %76, %75 : vector<64x64xf32>
    %c168 = arith.constant 168 : index
    %c0_29 = arith.constant 0 : index
    %78 = vector.load %arg3[%c168, %c0_29] : memref<344x128xf32, #tpu.memory_space<vmem>>, vector<32x64xf32>
    %cst_30 = arith.constant dense<0.000000e+00> : vector<64x64xf32>
    %79 = tpu.matmul %68, %78, %cst_30 {dimension_numbers = #tpu.dot_dimension_numbers<[1], [0], [0], [1], [0, 0, 1, 1], [], []>} : vector<64x32xf32>, vector<32x64xf32>, vector<64x64xf32> -> vector<64x64xf32>
    %80 = arith.addf %77, %79 : vector<64x64xf32>
    %81 = vector.extract_strided_slice %71 {offsets = [10, 0], sizes = [64, 32], strides = [1, 1]} : vector<80x32xf32> to vector<64x32xf32>
    %c200 = arith.constant 200 : index
    %c0_31 = arith.constant 0 : index
    %82 = vector.load %arg3[%c200, %c0_31] : memref<344x128xf32, #tpu.memory_space<vmem>>, vector<32x64xf32>
    %cst_32 = arith.constant dense<0.000000e+00> : vector<64x64xf32>
    %83 = tpu.matmul %81, %82, %cst_32 {dimension_numbers = #tpu.dot_dimension_numbers<[1], [0], [0], [1], [0, 0, 1, 1], [], []>} : vector<64x32xf32>, vector<32x64xf32>, vector<64x64xf32> -> vector<64x64xf32>
    %84 = arith.addf %80, %83 : vector<64x64xf32>
    %85 = vector.extract_strided_slice %84 {offsets = [0, 0], sizes = [64, 32], strides = [1, 1]} : vector<64x64xf32> to vector<64x32xf32>
    %86 = math.tanh %85 : vector<64x32xf32>
    %87 = vector.extract_strided_slice %84 {offsets = [0, 32], sizes = [64, 32], strides = [1, 1]} : vector<64x64xf32> to vector<64x32xf32>
    %88 = arith.negf %87 : vector<64x32xf32>
    %89 = math.exp %88 : vector<64x32xf32>
    %cst_33 = arith.constant 1.000000e+00 : f32
    %90 = vector.broadcast %cst_33 : f32 to vector<64x32xf32>
    %91 = arith.addf %90, %89 : vector<64x32xf32>
    %92 = arith.divf %90, %91 : vector<64x32xf32>
    %93 = arith.mulf %86, %92 : vector<64x32xf32>
    %c232 = arith.constant 232 : index
    %c0_34 = arith.constant 0 : index
    %94 = vector.load %arg3[%c232, %c0_34] : memref<344x128xf32, #tpu.memory_space<vmem>>, vector<32x32xf32>
    %cst_35 = arith.constant dense<0.000000e+00> : vector<64x32xf32>
    %95 = tpu.matmul %93, %94, %cst_35 {dimension_numbers = #tpu.dot_dimension_numbers<[1], [0], [0], [1], [0, 0, 1, 1], [], []>} : vector<64x32xf32>, vector<32x32xf32>, vector<64x32xf32> -> vector<64x32xf32>
    %c328 = arith.constant 328 : index
    %c0_36 = arith.constant 0 : index
    %96 = vector.load %arg3[%c328, %c0_36] : memref<344x128xf32, #tpu.memory_space<vmem>>, vector<1x32xf32>
    %97 = vector.broadcast %96 : vector<1x32xf32> to vector<64x32xf32>
    %98 = arith.addf %95, %97 : vector<64x32xf32>
    %99 = arith.addf %70, %98 : vector<64x32xf32>
    %100 = arith.mulf %99, %21 : vector<64x32xf32>
    %c264 = arith.constant 264 : index
    %c0_37 = arith.constant 0 : index
    %101 = vector.load %arg3[%c264, %c0_37] : memref<344x128xf32, #tpu.memory_space<vmem>>, vector<32x128xf32>
    %cst_38 = arith.constant dense<0.000000e+00> : vector<64x128xf32>
    %102 = tpu.matmul %100, %101, %cst_38 {dimension_numbers = #tpu.dot_dimension_numbers<[1], [0], [0], [1], [0, 0, 1, 1], [], []>} : vector<64x32xf32>, vector<32x128xf32>, vector<64x128xf32> -> vector<64x128xf32>
    %c336 = arith.constant 336 : index
    %c0_39 = arith.constant 0 : index
    %103 = vector.load %arg3[%c336, %c0_39] : memref<344x128xf32, #tpu.memory_space<vmem>>, vector<1x128xf32>
    %104 = vector.broadcast %103 : vector<1x128xf32> to vector<64x128xf32>
    %105 = arith.addf %102, %104 : vector<64x128xf32>
    %106 = arith.mulf %105, %23 : vector<64x128xf32>
    %107 = vector.extract_strided_slice %106 {offsets = [8, 0], sizes = [16, 128], strides = [1, 1]} : vector<64x128xf32> to vector<16x128xf32>
    %c0_40 = arith.constant 0 : index
    %c0_41 = arith.constant 0 : index
    %c0_42 = arith.constant 0 : index
    %108 = vector.load %arg4[%c0_40, %c0_41, %c0_42] : memref<2x16x128xf32, #tpu.memory_space<vmem>>, vector<1x16x128xf32>
    %109 = vector.shape_cast %108 : vector<1x16x128xf32> to vector<16x128xf32>
    %110 = vector.shape_cast %107 : vector<16x128xf32> to vector<1x16x128xf32>
    tpu.vector_store %arg4[%c0_40, %c0_41, %c0_42], %110 {strides = array<i32>} : memref<2x16x128xf32, #tpu.memory_space<vmem>>, vector<1x16x128xf32>,
    %111 = vector.extract_strided_slice %106 {offsets = [40, 0], sizes = [16, 128], strides = [1, 1]} : vector<64x128xf32> to vector<16x128xf32>
    %c1_43 = arith.constant 1 : index
    %c0_44 = arith.constant 0 : index
    %c0_45 = arith.constant 0 : index
    %112 = vector.load %arg4[%c1_43, %c0_44, %c0_45] : memref<2x16x128xf32, #tpu.memory_space<vmem>>, vector<1x16x128xf32>
    %113 = vector.shape_cast %112 : vector<1x16x128xf32> to vector<16x128xf32>
    %114 = vector.shape_cast %111 : vector<16x128xf32> to vector<1x16x128xf32>
    tpu.vector_store %arg4[%c1_43, %c0_44, %c0_45], %114 {strides = array<i32>} : memref<2x16x128xf32, #tpu.memory_space<vmem>>, vector<1x16x128xf32>,
    return
  }
  func.func @transform_0(%arg0: i32, %arg1: memref<2xi32, #tpu.memory_space<smem>>) -> (i32, i32, i32) {
    %c0_i32 = arith.constant 0 : i32
    %c0_i32_0 = arith.constant 0 : i32
    %c0_i32_1 = arith.constant 0 : i32
    %c0_i32_2 = arith.constant 0 : i32
    return %c0_i32, %c0_i32_0, %c0_i32_1 : i32, i32, i32
  }
  func.func @transform_1(%arg0: i32, %arg1: memref<2xi32, #tpu.memory_space<smem>>) -> (i32, i32) {
    %c0_i32 = arith.constant 0 : i32
    %c0_i32_0 = arith.constant 0 : i32
    %c0_i32_1 = arith.constant 0 : i32
    return %c0_i32, %c0_i32_0 : i32, i32
  }
  func.func @transform_2(%arg0: i32, %arg1: memref<2xi32, #tpu.memory_space<smem>>) -> (i32, i32, i32) {
    %c0_i32 = arith.constant 0 : i32
    %c0_i32_0 = arith.constant 0 : i32
    %c0_i32_1 = arith.constant 0 : i32
    %c0_i32_2 = arith.constant 0 : i32
    return %c0_i32, %c0_i32_0, %c0_i32_1 : i32, i32, i32
  }
}

</mosaic_0001>

<llo_original>
// kernel: ying_decoder_forward.1
$region0: #{ying_decoder_forward.1}
  #allocation0 [shape = 'u32[]', space=smem, size = 0x4, offset = 0x4, fixed_abs, tag = 'smem constant byte address 0x4 - core index']
  #allocation1 [shape = 'u32[144,128]{1,0:T(1,128)}', space=vmem, size = 0x12000, scoped, tag = 'internal scratch']
  #allocation2 [shape = 's32[1]{0}', space=sflag, size = 0x4, scoped, tag = 'scoped memory for ying_decoder_forward.1']
  #allocation3 [shape = 'u8[512]{0}', space=smem, size = 0x200, scoped, tag = 'prefetched SMEM operand 0']
  %s0 = inlined_call_operand.vmem [shape: s32[2], index: 0, kind: input, shape index: {}]
  %s1 = inlined_call_operand.vmem [shape: f32[2,16,8], index: 1, kind: input, shape index: {}]
  %s2 = inlined_call_operand.hbm [shape: f32[344,128], index: 2, kind: input, shape index: {}]
  %s3 = inlined_call_operand.vmem [shape: f32[2,16,128], index: 3, kind: output, shape index: {}]
  %s4 = sld [smem:[#allocation0]]
  $region22: #{ying_decoder_forward.1} parent=0
    _
  %s6 = ssub.s32 1, %s4
  %s7 = scalar_select 0, %s6, %s4
  %s8 = sshll.u32 %s0, 4
  %s9 = int_to_ptr.vmem [resolvable:$true] %s8
  %11 = dma.vmem_to_smem %s9, 16, [#allocation3], [#allocation2]
  %12 = dma.done [#allocation2], 16
  %13 = sfence
  $region1: #{ying_decoder_forward.1} parent=0
    #allocation4 [shape = 'u8[176128]{0}', space=vmem, size = 0x2b000, scoped, tag = 'input window, operand 2, single buffered']
    #allocation5 [shape = 's32[1]{0}', space=sflag, size = 0x4, scoped, tag = 'scoped memory for ying_decoder_forward.1']
    %14 = vsyncpa [#allocation5], 0
    // Predicated region
    $region2: #{ying_decoder_forward.1} parent=1 // pred_check
      _
    $region3: #{ying_decoder_forward.1} parent=1 // pred_check_branch
      %16 = sbr.rel (0) target = $region5
    $region4: #{ying_decoder_forward.1} parent=1 // pred_region
      _
    $region5: #{ying_decoder_forward.1} parent=1 // pred_fallthru
      _
    // Predicated region
    $region6: #{ying_decoder_forward.1} parent=1 // pred_check
      _
    $region7: #{ying_decoder_forward.1} parent=1 // pred_check_branch
      %18 = sbr.rel (0) target = $region9
    $region8: #{ying_decoder_forward.1} parent=1 // pred_region
      %s20 = ssub.s32 5504, 5504
      %21 = vsyncadd [#allocation5], %s20
      %s22 = sshll.u32 [#allocation4], 4
      %s23 = int_to_ptr.vmem [resolvable:$true] %s22
      %28 = dma.hbm_to_vmem [thread:$0]  %s2, 5504, %s23, [#allocation5], 128, 128, 8
    $region9: #{ying_decoder_forward.1} parent=1 // pred_fallthru
      _
    // Predicated region
    $region10: #{ying_decoder_forward.1} parent=1 // pred_check
      _
    $region11: #{ying_decoder_forward.1} parent=1 // pred_check_branch
      %30 = sbr.rel (0) target = $region13
    $region12: #{ying_decoder_forward.1} parent=1 // pred_region
      %31 = dma.done [#allocation5], 5504
    $region13: #{ying_decoder_forward.1} parent=1 // pred_fallthru
      _
    %v32 = vlaneseq
    %v33 = vshrl.u32 %v32, 7
    %v34 = vadd.s32 %v33, 8
    %v35 = vadd.s32 %v33, 16
    %v36 = vadd.s32 %v33, 24
    %vm37 = vcmp.ge.s32.totalorder %v33, 8
    %vm38 = vcmp.ge.s32.totalorder %v34, 8
    %vm39 = vcmp.ge.s32.totalorder %v35, 8
    %vm40 = vcmp.ge.s32.totalorder %v36, 8
    %s41 = sld [smem:[#allocation3]]
    %s42 = sadd.s32 %s41, 8
    %v43 = vstv %s42
    %vm44 = vcmp.lt.s32.totalorder %v33, %v43
    %vm45 = vcmp.lt.s32.totalorder %v34, %v43
    %vm46 = vcmp.lt.s32.totalorder %v35, %v43
    %vm47 = vcmp.lt.s32.totalorder %v36, %v43
    %vm48 = vmand %vm37, %vm44
    %vm49 = vmand %vm38, %vm45
    %vm50 = vmand %vm39, %vm46
    %vm51 = vmand %vm40, %vm47
    %v52 = vsel %vm48, 1, 0
    %v53 = vsel %vm49, 1, 0
    %v54 = vsel %vm50, 1, 0
    %v55 = vsel %vm51, 1, 0
    %v56 = vcvt.s32.f32 %v52
    %v57 = vcvt.s32.f32 %v53
    %v58 = vcvt.s32.f32 %v54
    %v59 = vcvt.s32.f32 %v55
    %s60 = sld [smem:[#allocation3 + $0x1]]
    %s61 = sadd.s32 %s60, 8
    %v62 = vstv %s61
    %vm63 = vcmp.lt.s32.totalorder %v33, %v62
    %vm64 = vcmp.lt.s32.totalorder %v34, %v62
    %vm65 = vcmp.lt.s32.totalorder %v35, %v62
    %vm66 = vcmp.lt.s32.totalorder %v36, %v62
    %vm67 = vmand %vm37, %vm63
    %vm68 = vmand %vm38, %vm64
    %vm69 = vmand %vm39, %vm65
    %vm70 = vmand %vm40, %vm66
    %v71 = vsel %vm67, 1, 0
    %v72 = vsel %vm68, 1, 0
    %v73 = vsel %vm69, 1, 0
    %v74 = vsel %vm70, 1, 0
    %v75 = vcvt.s32.f32 %v71
    %v76 = vcvt.s32.f32 %v72
    %v77 = vcvt.s32.f32 %v73
    %v78 = vcvt.s32.f32 %v74
    %80 = vset.pattern.permute.xlu0 0
    %81 = vperm.xlu0 %80, %v56
    %v82 = vpop.permute.xlu0 %81
    %85 = vset.pattern.permute.xlu0 0
    %86 = vperm.xlu0 %85, %v57
    %v87 = vpop.permute.xlu0 %86
    %90 = vset.pattern.permute.xlu0 0
    %91 = vperm.xlu0 %90, %v58
    %v92 = vpop.permute.xlu0 %91
    %95 = vset.pattern.permute.xlu0 0
    %96 = vperm.xlu0 %95, %v59
    %v97 = vpop.permute.xlu0 %96
    %100 = vset.pattern.permute.xlu0 0
    %101 = vperm.xlu0 %100, %v75
    %v102 = vpop.permute.xlu0 %101
    %105 = vset.pattern.permute.xlu0 0
    %106 = vperm.xlu0 %105, %v76
    %v107 = vpop.permute.xlu0 %106
    %110 = vset.pattern.permute.xlu0 0
    %111 = vperm.xlu0 %110, %v77
    %v112 = vpop.permute.xlu0 %111
    %115 = vset.pattern.permute.xlu0 0
    %116 = vperm.xlu0 %115, %v78
    %v117 = vpop.permute.xlu0 %116
    %v119 = vld [vmem:[%s1] sm:$0xff]
    %v120 = vld [vmem:[%s1 + $0x8] sm:$0xff]
    %s121 = scalar_lea.vmem %s1, 16
    %v122 = vld [vmem:[%s121] sm:$0xff]
    %v123 = vld [vmem:[%s121 + $0x8] sm:$0xff]
    %v124 = vld [vmem:[#allocation4] sm:$0xff]
    %v125 = vld [vmem:[#allocation4 + $0x128] sm:$0x1]
    %v126 = vlaneseq
    %v127 = vshrl.u32 %v126, 7
    %v128 = vsub.s32 0, %v127
    %v129 = vrot.slane %v125, %v128
    %vm130 = vcmask 64512
    %v132 = vsel %vm130, 0.0, 0
    %v135 = vsel %vm130, %v119, 0
    %v138 = vsel %vm130, %v120, 0
    %v141 = vsel %vm130, %v122, 0
    %v144 = vsel %vm130, %v123, 0
    %146 = vmatprep.subr.mxu0 0.0
    %147 = vmatpush1.msra.mxu0 %v124
    %148 = vmatprep.subr.mxu0 0.0
    %149 = vmatpush1.msra.mxu0 0.0
    %150 = vmatprep.subr.mxu0 0.0
    %151 = vmatpush1.msra.mxu0 0.0
    %152 = vmatprep.subr.mxu0 0.0
    %153 = vmatpush1.msra.mxu0 0.0
    %154 = vmatprep.subr.mxu0 0.0
    %155 = vmatpush1.msra.mxu0 0.0
    %156 = vmatprep.subr.mxu0 0.0
    %157 = vmatpush1.msra.mxu0 0.0
    %158 = vmatprep.subr.mxu0 0.0
    %159 = vmatpush1.msra.mxu0 0.0
    %160 = vmatprep.subr.mxu0 0.0
    %161 = vmatpush1.msra.mxu0 0.0
    %162 = vmatprep.subr.mxu0 0.0
    %163 = vmatpush1.msra.mxu0 0.0
    %164 = vmatprep.subr.mxu0 0.0
    %165 = vmatpush1.msra.mxu0 0.0
    %166 = vmatprep.subr.mxu0 0.0
    %167 = vmatpush1.msra.mxu0 0.0
    %168 = vmatprep.subr.mxu0 0.0
    %169 = vmatpush1.msra.mxu0 0.0
    %170 = vmatprep.subr.mxu0 0.0
    %171 = vmatpush1.msra.mxu0 0.0
    %172 = vmatprep.subr.mxu0 0.0
    %173 = vmatpush1.msra.mxu0 0.0
    %174 = vmatprep.subr.mxu0 0.0
    %175 = vmatpush1.msra.mxu0 0.0
    %176 = vmatprep.subr.mxu0 0.0
    %177 = vmatpush1.msra.mxu0 0.0
    %178 = vmatprep.subr.mxu0 0.0
    %179 = vmatpush1.msra.mxu0 0.0
    %180 = vmatprep.subr.mxu0 0.0
    %181 = vmatpush1.msra.mxu0 0.0
    %182 = vmatprep.subr.mxu0 0.0
    %183 = vmatpush1.msra.mxu0 0.0
    %184 = vmatprep.subr.mxu0 0.0
    %185 = vmatpush1.msra.mxu0 0.0
    %186 = vmatprep.subr.mxu0 0.0
    %187 = vmatpush1.msra.mxu0 0.0
    %188 = vmatprep.subr.mxu0 0.0
    %189 = vmatpush1.msra.mxu0 0.0
    %190 = vmatprep.subr.mxu0 0.0
    %191 = vmatpush1.msra.mxu0 0.0
    %192 = vmatprep.subr.mxu0 0.0
    %193 = vmatpush1.msra.mxu0 0.0
    %194 = vmatprep.subr.mxu0 0.0
    %195 = vmatpush1.msra.mxu0 0.0
    %196 = vmatprep.subr.mxu0 0.0
    %197 = vmatpush1.msra.mxu0 0.0
    %198 = vmatprep.subr.mxu0 0.0
    %199 = vmatpush1.msra.mxu0 0.0
    %200 = vmatprep.subr.mxu0 0.0
    %201 = vmatpush1.msra.mxu0 0.0
    %202 = vmatprep.subr.mxu0 0.0
    %203 = vmatpush1.msra.mxu0 0.0
    %204 = vmatprep.subr.mxu0 0.0
    %205 = vmatpush1.msra.mxu0 0.0
    %206 = vmatprep.subr.mxu0 0.0
    %207 = vmatpush1.msra.mxu0 0.0
    %208 = vmatprep.subr.mxu0 0.0
    %209 = vmatpush1.msra.mxu0 0.0
    %210 = vmatprep.mubr.f32.mxu0 0.0
    %211 = vmatmul.mubr.f32.gmra.mrb[0].mxu0 %v132
    %v212 = vpop.f32.mrb[0].mxu0
    %v213 = vadd.f32 %v129, %v212
    %v214 = vpop.f32.mrb[0].mxu0
    %215 = vmatprep.mubr.f32.mxu0 0.0
    %216 = vmatmul.mubr.f32.gmra.mrb[0].mxu0 %v135
    %v217 = vpop.f32.mrb[0].mxu0
    %v218 = vadd.f32 %v129, %v217
    %v219 = vpop.f32.mrb[0].mxu0
    %220 = vmatprep.mubr.f32.mxu0 0.0
    %221 = vmatmul.mubr.f32.gmra.mrb[0].mxu0 %v138
    %v222 = vpop.f32.mrb[0].mxu0
    %v223 = vadd.f32 %v129, %v222
    %v224 = vpop.f32.mrb[0].mxu0
    %225 = vmatprep.mubr.f32.mxu0 0.0
    %226 = vmatmul.mubr.f32.gmra.mrb[0].mxu0 %v132
    %v227 = vpop.f32.mrb[0].mxu0
    %v228 = vadd.f32 %v129, %v227
    %v229 = vpop.f32.mrb[0].mxu0
    %230 = vmatprep.mubr.f32.mxu0 0.0
    %231 = vmatmul.mubr.f32.gmra.mrb[0].mxu0 %v132
    %v232 = vpop.f32.mrb[0].mxu0
    %v233 = vadd.f32 %v129, %v232
    %v234 = vpop.f32.mrb[0].mxu0
    %235 = vmatprep.mubr.f32.mxu0 0.0
    %236 = vmatmul.mubr.f32.gmra.mrb[0].mxu0 %v141
    %v237 = vpop.f32.mrb[0].mxu0
    %v238 = vadd.f32 %v129, %v237
    %v239 = vpop.f32.mrb[0].mxu0
    %240 = vmatprep.mubr.f32.mxu0 0.0
    %241 = vmatmul.mubr.f32.gmra.mrb[0].mxu0 %v144
    %v242 = vpop.f32.mrb[0].mxu0
    %v243 = vadd.f32 %v129, %v242
    %v244 = vpop.f32.mrb[0].mxu0
    %245 = vmatprep.mubr.f32.mxu0 0.0
    %246 = vmatmul.mubr.f32.gmra.mrb[0].mxu0 %v132
    %v247 = vpop.f32.mrb[0].mxu0
    %v248 = vadd.f32 %v129, %v247
    %v249 = vpop.f32.mrb[0].mxu0
    %250 = vdwg.mxu0
    %v251 = vmul.f32 %v213, %v82
    %v252 = vmul.f32 %v218, %v87
    %v253 = vmul.f32 %v223, %v92
    %v254 = vmul.f32 %v228, %v97
    %v255 = vmul.f32 %v233, %v102
    %v256 = vmul.f32 %v238, %v107
    %v257 = vmul.f32 %v243, %v112
    %v258 = vmul.f32 %v248, %v117
    %v259 = vld [vmem:[#allocation4 + $0x130] sm:$0x1]
    %v260 = vld [vmem:[#allocation4 + $0x8] sm:$0xff]
    %v261 = vld [vmem:[#allocation4 + $0x10] sm:$0xff]
    %v262 = vld [vmem:[#allocation4 + $0x18] sm:$0xff]
    %v263 = vld [vmem:[#allocation4 + $0x20] sm:$0xff]
    %vm272 = vcmask 1040384
    %v273 = vrot.slane 0.0, 7
    %v274 = vrot.slane %v251, 7
    %v275 = vsel %vm272, %v273, %v274
    %v276 = vrot.slane %v252, 7
    %v277 = vsel %vm272, %v274, %v276
    %v278 = vrot.slane %v253, 7
    %v279 = vsel %vm272, %v276, %v278
    %v280 = vrot.slane %v254, 7
    %v281 = vsel %vm272, %v278, %v280
    %v282 = vrot.slane %v255, 7
    %v283 = vsel %vm272, %v280, %v282
    %v284 = vrot.slane %v256, 7
    %v285 = vsel %vm272, %v282, %v284
    %v286 = vrot.slane %v257, 7
    %v287 = vsel %vm272, %v284, %v286
    %v288 = vrot.slane %v258, 7
    %v289 = vsel %vm272, %v286, %v288
    %vm290 = vcmask 261120
    %v291 = vsel %vm290, %v275, 0
    %v293 = vsel %vm290, %v277, 0
    %v295 = vsel %vm290, %v279, 0
    %v297 = vsel %vm290, %v281, 0
    %v299 = vsel %vm290, %v283, 0
    %v301 = vsel %vm290, %v285, 0
    %v303 = vsel %vm290, %v287, 0
    %v305 = vsel %vm290, %v289, 0
    %307 = vmatprep.subr.mxu0 0.0
    %308 = vmatpush1.msra.mxu0 %v260
    %309 = vmatprep.subr.mxu0 0.0
    %310 = vmatpush1.msra.mxu0 %v261
    %311 = vmatprep.subr.mxu0 0.0
    %312 = vmatpush1.msra.mxu0 %v262
    %313 = vmatprep.subr.mxu0 0.0
    %314 = vmatpush1.msra.mxu0 %v263
    %315 = vmatprep.subr.mxu0 0.0
    %316 = vmatpush1.msra.mxu0 0.0
    %317 = vmatprep.subr.mxu0 0.0
    %318 = vmatpush1.msra.mxu0 0.0
    %319 = vmatprep.subr.mxu0 0.0
    %320 = vmatpush1.msra.mxu0 0.0
    %321 = vmatprep.subr.mxu0 0.0
    %322 = vmatpush1.msra.mxu0 0.0
    %323 = vmatprep.subr.mxu0 0.0
    %324 = vmatpush1.msra.mxu0 0.0
    %325 = vmatprep.subr.mxu0 0.0
    %326 = vmatpush1.msra.mxu0 0.0
    %327 = vmatprep.subr.mxu0 0.0
    %328 = vmatpush1.msra.mxu0 0.0
    %329 = vmatprep.subr.mxu0 0.0
    %330 = vmatpush1.msra.mxu0 0.0
    %331 = vmatprep.subr.mxu0 0.0
    %332 = vmatpush1.msra.mxu0 0.0
    %333 = vmatprep.subr.mxu0 0.0
    %334 = vmatpush1.msra.mxu0 0.0
    %335 = vmatprep.subr.mxu0 0.0
    %336 = vmatpush1.msra.mxu0 0.0
    %337 = vmatprep.subr.mxu0 0.0
    %338 = vmatpush1.msra.mxu0 0.0
    %339 = vmatprep.subr.mxu0 0.0
    %340 = vmatpush1.msra.mxu0 0.0
    %341 = vmatprep.subr.mxu0 0.0
    %342 = vmatpush1.msra.mxu0 0.0
    %343 = vmatprep.subr.mxu0 0.0
    %344 = vmatpush1.msra.mxu0 0.0
    %345 = vmatprep.subr.mxu0 0.0
    %346 = vmatpush1.msra.mxu0 0.0
    %347 = vmatprep.subr.mxu0 0.0
    %348 = vmatpush1.msra.mxu0 0.0
    %349 = vmatprep.subr.mxu0 0.0
    %350 = vmatpush1.msra.mxu0 0.0
    %351 = vmatprep.subr.mxu0 0.0
    %352 = vmatpush1.msra.mxu0 0.0
    %353 = vmatprep.subr.mxu0 0.0
    %354 = vmatpush1.msra.mxu0 0.0
    %355 = vmatprep.subr.mxu0 0.0
    %356 = vmatpush1.msra.mxu0 0.0
    %357 = vmatprep.subr.mxu0 0.0
    %358 = vmatpush1.msra.mxu0 0.0
    %359 = vmatprep.subr.mxu0 0.0
    %360 = vmatpush1.msra.mxu0 0.0
    %361 = vmatprep.subr.mxu0 0.0
    %362 = vmatpush1.msra.mxu0 0.0
    %363 = vmatprep.subr.mxu0 0.0
    %364 = vmatpush1.msra.mxu0 0.0
    %365 = vmatprep.subr.mxu0 0.0
    %366 = vmatpush1.msra.mxu0 0.0
    %367 = vmatprep.subr.mxu0 0.0
    %368 = vmatpush1.msra.mxu0 0.0
    %369 = vmatprep.subr.mxu0 0.0
    %370 = vmatpush1.msra.mxu0 0.0
    %371 = vmatprep.mubr.f32.mxu0 0.0
    %372 = vmatmul.mubr.f32.gmra.mrb[0].mxu0 %v291
    %v373 = vpop.f32.mrb[0].mxu0
    %v374 = vadd.f32 0.0, %v373
    %v375 = vpop.f32.mrb[0].mxu0
    %376 = vmatprep.mubr.f32.mxu0 0.0
    %377 = vmatmul.mubr.f32.gmra.mrb[0].mxu0 %v293
    %v378 = vpop.f32.mrb[0].mxu0
    %v379 = vadd.f32 0.0, %v378
    %v380 = vpop.f32.mrb[0].mxu0
    %381 = vmatprep.mubr.f32.mxu0 0.0
    %382 = vmatmul.mubr.f32.gmra.mrb[0].mxu0 %v295
    %v383 = vpop.f32.mrb[0].mxu0
    %v384 = vadd.f32 0.0, %v383
    %v385 = vpop.f32.mrb[0].mxu0
    %386 = vmatprep.mubr.f32.mxu0 0.0
    %387 = vmatmul.mubr.f32.gmra.mrb[0].mxu0 %v297
    %v388 = vpop.f32.mrb[0].mxu0
    %v389 = vadd.f32 0.0, %v388
    %v390 = vpop.f32.mrb[0].mxu0
    %391 = vmatprep.mubr.f32.mxu0 0.0
    %392 = vmatmul.mubr.f32.gmra.mrb[0].mxu0 %v299
    %v393 = vpop.f32.mrb[0].mxu0
    %v394 = vadd.f32 0.0, %v393
    %v395 = vpop.f32.mrb[0].mxu0
    %396 = vmatprep.mubr.f32.mxu0 0.0
    %397 = vmatmul.mubr.f32.gmra.mrb[0].mxu0 %v301
    %v398 = vpop.f32.mrb[0].mxu0
    %v399 = vadd.f32 0.0, %v398
    %v400 = vpop.f32.mrb[0].mxu0
    %401 = vmatprep.mubr.f32.mxu0 0.0
    %402 = vmatmul.mubr.f32.gmra.mrb[0].mxu0 %v303
    %v403 = vpop.f32.mrb[0].mxu0
    %v404 = vadd.f32 0.0, %v403
    %v405 = vpop.f32.mrb[0].mxu0
    %406 = vmatprep.mubr.f32.mxu0 0.0
    %407 = vmatmul.mubr.f32.gmra.mrb[0].mxu0 %v305
    %v408 = vpop.f32.mrb[0].mxu0
    %v409 = vadd.f32 0.0, %v408
    %v410 = vpop.f32.mrb[0].mxu0
    %411 = vdwg.mxu0
    %v412 = vlaneseq
    %v413 = vshrl.u32 %v412, 7
    %v414 = vsub.s32 0, %v413
    %v415 = vrot.slane %v259, %v414
    %v416 = vadd.f32 %v415, %v374
    %v417 = vadd.f32 %v415, %v379
    %v418 = vadd.f32 %v415, %v384
    %v419 = vadd.f32 %v415, %v389
    %v420 = vadd.f32 %v415, %v394
    %v421 = vadd.f32 %v415, %v399
    %v422 = vadd.f32 %v415, %v404
    %v423 = vadd.f32 %v415, %v409
    %v424 = vld [vmem:[#allocation4 + $0x28] sm:$0xff]
    %v425 = vld [vmem:[#allocation4 + $0x30] sm:$0xff]
    %v426 = vld [vmem:[#allocation4 + $0x38] sm:$0xff]
    %v427 = vld [vmem:[#allocation4 + $0x40] sm:$0xff]
    %v428 = vsel %vm290, %v251, 0
    %v430 = vsel %vm290, %v252, 0
    %v432 = vsel %vm290, %v253, 0
    %v434 = vsel %vm290, %v254, 0
    %v436 = vsel %vm290, %v255, 0
    %v438 = vsel %vm290, %v256, 0
    %v440 = vsel %vm290, %v257, 0
    %v442 = vsel %vm290, %v258, 0
    %444 = vmatprep.subr.mxu0 0.0
    %445 = vmatpush1.msra.mxu0 %v424
    %446 = vmatprep.subr.mxu0 0.0
    %447 = vmatpush1.msra.mxu0 %v425
    %448 = vmatprep.subr.mxu0 0.0
    %449 = vmatpush1.msra.mxu0 %v426
    %450 = vmatprep.subr.mxu0 0.0
    %451 = vmatpush1.msra.mxu0 %v427
    %452 = vmatprep.subr.mxu0 0.0
    %453 = vmatpush1.msra.mxu0 0.0
    %454 = vmatprep.subr.mxu0 0.0
    %455 = vmatpush1.msra.mxu0 0.0
    %456 = vmatprep.subr.mxu0 0.0
    %457 = vmatpush1.msra.mxu0 0.0
    %458 = vmatprep.subr.mxu0 0.0
    %459 = vmatpush1.msra.mxu0 0.0
    %460 = vmatprep.subr.mxu0 0.0
    %461 = vmatpush1.msra.mxu0 0.0
    %462 = vmatprep.subr.mxu0 0.0
    %463 = vmatpush1.msra.mxu0 0.0
    %464 = vmatprep.subr.mxu0 0.0
    %465 = vmatpush1.msra.mxu0 0.0
    %466 = vmatprep.subr.mxu0 0.0
    %467 = vmatpush1.msra.mxu0 0.0
    %468 = vmatprep.subr.mxu0 0.0
    %469 = vmatpush1.msra.mxu0 0.0
    %470 = vmatprep.subr.mxu0 0.0
    %471 = vmatpush1.msra.mxu0 0.0
    %472 = vmatprep.subr.mxu0 0.0
    %473 = vmatpush1.msra.mxu0 0.0
    %474 = vmatprep.subr.mxu0 0.0
    %475 = vmatpush1.msra.mxu0 0.0
    %476 = vmatprep.subr.mxu0 0.0
    %477 = vmatpush1.msra.mxu0 0.0
    %478 = vmatprep.subr.mxu0 0.0
    %479 = vmatpush1.msra.mxu0 0.0
    %480 = vmatprep.subr.mxu0 0.0
    %481 = vmatpush1.msra.mxu0 0.0
    %482 = vmatprep.subr.mxu0 0.0
    %483 = vmatpush1.msra.mxu0 0.0
    %484 = vmatprep.subr.mxu0 0.0
    %485 = vmatpush1.msra.mxu0 0.0
    %486 = vmatprep.subr.mxu0 0.0
    %487 = vmatpush1.msra.mxu0 0.0
    %488 = vmatprep.subr.mxu0 0.0
    %489 = vmatpush1.msra.mxu0 0.0
    %490 = vmatprep.subr.mxu0 0.0
    %491 = vmatpush1.msra.mxu0 0.0
    %492 = vmatprep.subr.mxu0 0.0
    %493 = vmatpush1.msra.mxu0 0.0
    %494 = vmatprep.subr.mxu0 0.0
    %495 = vmatpush1.msra.mxu0 0.0
    %496 = vmatprep.subr.mxu0 0.0
    %497 = vmatpush1.msra.mxu0 0.0
    %498 = vmatprep.subr.mxu0 0.0
    %499 = vmatpush1.msra.mxu0 0.0
    %500 = vmatprep.subr.mxu0 0.0
    %501 = vmatpush1.msra.mxu0 0.0
    %502 = vmatprep.subr.mxu0 0.0
    %503 = vmatpush1.msra.mxu0 0.0
    %504 = vmatprep.subr.mxu0 0.0
    %505 = vmatpush1.msra.mxu0 0.0
    %506 = vmatprep.subr.mxu0 0.0
    %507 = vmatpush1.msra.mxu0 0.0
    %508 = vmatprep.mubr.f32.mxu0 0.0
    %509 = vmatmul.mubr.f32.gmra.mrb[0].mxu0 %v428
    %v510 = vpop.f32.mrb[0].mxu0
    %v511 = vadd.f32 0.0, %v510
    %v512 = vpop.f32.mrb[0].mxu0
    %513 = vmatprep.mubr.f32.mxu0 0.0
    %514 = vmatmul.mubr.f32.gmra.mrb[0].mxu0 %v430
    %v515 = vpop.f32.mrb[0].mxu0
    %v516 = vadd.f32 0.0, %v515
    %v517 = vpop.f32.mrb[0].mxu0
    %518 = vmatprep.mubr.f32.mxu0 0.0
    %519 = vmatmul.mubr.f32.gmra.mrb[0].mxu0 %v432
    %v520 = vpop.f32.mrb[0].mxu0
    %v521 = vadd.f32 0.0, %v520
    %v522 = vpop.f32.mrb[0].mxu0
    %523 = vmatprep.mubr.f32.mxu0 0.0
    %524 = vmatmul.mubr.f32.gmra.mrb[0].mxu0 %v434
    %v525 = vpop.f32.mrb[0].mxu0
    %v526 = vadd.f32 0.0, %v525
    %v527 = vpop.f32.mrb[0].mxu0
    %528 = vmatprep.mubr.f32.mxu0 0.0
    %529 = vmatmul.mubr.f32.gmra.mrb[0].mxu0 %v436
    %v530 = vpop.f32.mrb[0].mxu0
    %v531 = vadd.f32 0.0, %v530
    %v532 = vpop.f32.mrb[0].mxu0
    %533 = vmatprep.mubr.f32.mxu0 0.0
    %534 = vmatmul.mubr.f32.gmra.mrb[0].mxu0 %v438
    %v535 = vpop.f32.mrb[0].mxu0
    %v536 = vadd.f32 0.0, %v535
    %v537 = vpop.f32.mrb[0].mxu0
    %538 = vmatprep.mubr.f32.mxu0 0.0
    %539 = vmatmul.mubr.f32.gmra.mrb[0].mxu0 %v440
    %v540 = vpop.f32.mrb[0].mxu0
    %v541 = vadd.f32 0.0, %v540
    %v542 = vpop.f32.mrb[0].mxu0
    %543 = vmatprep.mubr.f32.mxu0 0.0
    %544 = vmatmul.mubr.f32.gmra.mrb[0].mxu0 %v442
    %v545 = vpop.f32.mrb[0].mxu0
    %v546 = vadd.f32 0.0, %v545
    %v547 = vpop.f32.mrb[0].mxu0
    %548 = vdwg.mxu0
    %v549 = vadd.f32 %v416, %v511
    %v550 = vadd.f32 %v417, %v516
    %v551 = vadd.f32 %v418, %v521
    %v552 = vadd.f32 %v419, %v526
    %v553 = vadd.f32 %v420, %v531
    %v554 = vadd.f32 %v421, %v536
    %v555 = vadd.f32 %v422, %v541
    %v556 = vadd.f32 %v423, %v546
    %v557 = vld [vmem:[#allocation4 + $0x48] sm:$0xff]
    %v558 = vld [vmem:[#allocation4 + $0x50] sm:$0xff]
    %v559 = vld [vmem:[#allocation4 + $0x58] sm:$0xff]
    %v560 = vld [vmem:[#allocation4 + $0x60] sm:$0xff]
    %vm561 = vcmask 1046528
    %v562 = vrot.slane %v251, 1
    %v563 = vrot.slane %v252, 1
    %v564 = vsel %vm561, %v562, %v563
    %v565 = vrot.slane %v253, 1
    %v566 = vsel %vm561, %v563, %v565
    %v567 = vrot.slane %v254, 1
    %v568 = vsel %vm561, %v565, %v567
    %v569 = vrot.slane %v255, 1
    %v570 = vsel %vm561, %v567, %v569
    %v571 = vrot.slane %v256, 1
    %v572 = vsel %vm561, %v569, %v571
    %v573 = vrot.slane %v257, 1
    %v574 = vsel %vm561, %v571, %v573
    %v575 = vrot.slane %v258, 1
    %v576 = vsel %vm561, %v573, %v575
    %v577 = vrot.slane 0.0, 1
    %v578 = vsel %vm561, %v575, %v577
    %v579 = vsel %vm290, %v564, 0
    %v581 = vsel %vm290, %v566, 0
    %v583 = vsel %vm290, %v568, 0
    %v585 = vsel %vm290, %v570, 0
    %v587 = vsel %vm290, %v572, 0
    %v589 = vsel %vm290, %v574, 0
    %v591 = vsel %vm290, %v576, 0
    %v593 = vsel %vm290, %v578, 0
    %595 = vmatprep.subr.mxu0 0.0
    %596 = vmatpush1.msra.mxu0 %v557
    %597 = vmatprep.subr.mxu0 0.0
    %598 = vmatpush1.msra.mxu0 %v558
    %599 = vmatprep.subr.mxu0 0.0
    %600 = vmatpush1.msra.mxu0 %v559
    %601 = vmatprep.subr.mxu0 0.0
    %602 = vmatpush1.msra.mxu0 %v560
    %603 = vmatprep.subr.mxu0 0.0
    %604 = vmatpush1.msra.mxu0 0.0
    %605 = vmatprep.subr.mxu0 0.0
    %606 = vmatpush1.msra.mxu0 0.0
    %607 = vmatprep.subr.mxu0 0.0
    %608 = vmatpush1.msra.mxu0 0.0
    %609 = vmatprep.subr.mxu0 0.0
    %610 = vmatpush1.msra.mxu0 0.0
    %611 = vmatprep.subr.mxu0 0.0
    %612 = vmatpush1.msra.mxu0 0.0
    %613 = vmatprep.subr.mxu0 0.0
    %614 = vmatpush1.msra.mxu0 0.0
    %615 = vmatprep.subr.mxu0 0.0
    %616 = vmatpush1.msra.mxu0 0.0
    %617 = vmatprep.subr.mxu0 0.0
    %618 = vmatpush1.msra.mxu0 0.0
    %619 = vmatprep.subr.mxu0 0.0
    %620 = vmatpush1.msra.mxu0 0.0
    %621 = vmatprep.subr.mxu0 0.0
    %622 = vmatpush1.msra.mxu0 0.0
    %623 = vmatprep.subr.mxu0 0.0
    %624 = vmatpush1.msra.mxu0 0.0
    %625 = vmatprep.subr.mxu0 0.0
    %626 = vmatpush1.msra.mxu0 0.0
    %627 = vmatprep.subr.mxu0 0.0
    %628 = vmatpush1.msra.mxu0 0.0
    %629 = vmatprep.subr.mxu0 0.0
    %630 = vmatpush1.msra.mxu0 0.0
    %631 = vmatprep.subr.mxu0 0.0
    %632 = vmatpush1.msra.mxu0 0.0
    %633 = vmatprep.subr.mxu0 0.0
    %634 = vmatpush1.msra.mxu0 0.0
    %635 = vmatprep.subr.mxu0 0.0
    %636 = vmatpush1.msra.mxu0 0.0
    %637 = vmatprep.subr.mxu0 0.0
    %638 = vmatpush1.msra.mxu0 0.0
    %639 = vmatprep.subr.mxu0 0.0
    %640 = vmatpush1.msra.mxu0 0.0
    %641 = vmatprep.subr.mxu0 0.0
    %642 = vmatpush1.msra.mxu0 0.0
    %643 = vmatprep.subr.mxu0 0.0
    %644 = vmatpush1.msra.mxu0 0.0
    %645 = vmatprep.subr.mxu0 0.0
    %646 = vmatpush1.msra.mxu0 0.0
    %647 = vmatprep.subr.mxu0 0.0
    %648 = vmatpush1.msra.mxu0 0.0
    %649 = vmatprep.subr.mxu0 0.0
    %650 = vmatpush1.msra.mxu0 0.0
    %651 = vmatprep.subr.mxu0 0.0
    %652 = vmatpush1.msra.mxu0 0.0
    %653 = vmatprep.subr.mxu0 0.0
    %654 = vmatpush1.msra.mxu0 0.0
    %655 = vmatprep.subr.mxu0 0.0
    %656 = vmatpush1.msra.mxu0 0.0
    %657 = vmatprep.subr.mxu0 0.0
    %658 = vmatpush1.msra.mxu0 0.0
    %659 = vmatprep.mubr.f32.mxu0 0.0
    %660 = vmatmul.mubr.f32.gmra.mrb[0].mxu0 %v579
    %v661 = vpop.f32.mrb[0].mxu0
    %v662 = vadd.f32 0.0, %v661
    %v663 = vpop.f32.mrb[0].mxu0
    %664 = vmatprep.mubr.f32.mxu0 0.0
    %665 = vmatmul.mubr.f32.gmra.mrb[0].mxu0 %v581
    %v666 = vpop.f32.mrb[0].mxu0
    %v667 = vadd.f32 0.0, %v666
    %v668 = vpop.f32.mrb[0].mxu0
    %669 = vmatprep.mubr.f32.mxu0 0.0
    %670 = vmatmul.mubr.f32.gmra.mrb[0].mxu0 %v583
    %v671 = vpop.f32.mrb[0].mxu0
    %v672 = vadd.f32 0.0, %v671
    %v673 = vpop.f32.mrb[0].mxu0
    %674 = vmatprep.mubr.f32.mxu0 0.0
    %675 = vmatmul.mubr.f32.gmra.mrb[0].mxu0 %v585
    %v676 = vpop.f32.mrb[0].mxu0
    %v677 = vadd.f32 0.0, %v676
    %v678 = vpop.f32.mrb[0].mxu0
    %679 = vmatprep.mubr.f32.mxu0 0.0
    %680 = vmatmul.mubr.f32.gmra.mrb[0].mxu0 %v587
    %v681 = vpop.f32.mrb[0].mxu0
    %v682 = vadd.f32 0.0, %v681
    %v683 = vpop.f32.mrb[0].mxu0
    %684 = vmatprep.mubr.f32.mxu0 0.0
    %685 = vmatmul.mubr.f32.gmra.mrb[0].mxu0 %v589
    %v686 = vpop.f32.mrb[0].mxu0
    %v687 = vadd.f32 0.0, %v686
    %v688 = vpop.f32.mrb[0].mxu0
    %689 = vmatprep.mubr.f32.mxu0 0.0
    %690 = vmatmul.mubr.f32.gmra.mrb[0].mxu0 %v591
    %v691 = vpop.f32.mrb[0].mxu0
    %v692 = vadd.f32 0.0, %v691
    %v693 = vpop.f32.mrb[0].mxu0
    %694 = vmatprep.mubr.f32.mxu0 0.0
    %695 = vmatmul.mubr.f32.gmra.mrb[0].mxu0 %v593
    %v696 = vpop.f32.mrb[0].mxu0
    %v697 = vadd.f32 0.0, %v696
    %v698 = vpop.f32.mrb[0].mxu0
    %699 = vdwg.mxu0
    %v700 = vadd.f32 %v549, %v662
    %v701 = vadd.f32 %v550, %v667
    %v702 = vadd.f32 %v551, %v672
    %v703 = vadd.f32 %v552, %v677
    %v704 = vadd.f32 %v553, %v682
    %v705 = vadd.f32 %v554, %v687
    %v706 = vadd.f32 %v555, %v692
    %v707 = vadd.f32 %v556, %v697
    %v708 = vtanh.pop %v700
    %v709 = vtanh.pop %v701
    %v710 = vtanh.pop %v702
    %v711 = vtanh.pop %v703
    %v712 = vtanh.pop %v704
    %v713 = vtanh.pop %v705
    %v714 = vtanh.pop %v706
    %v715 = vtanh.pop %v707
    %v716 = vxor.u32 %v700, 2147483648
    %v717 = vxor.u32 %v701, 2147483648
    %v718 = vxor.u32 %v702, 2147483648
    %v719 = vxor.u32 %v703, 2147483648
    %v720 = vxor.u32 %v704, 2147483648
    %v721 = vxor.u32 %v705, 2147483648
    %v722 = vxor.u32 %v706, 2147483648
    %v723 = vxor.u32 %v707, 2147483648
    %v724 = vmul.f32 %v716, 1.442695
    %v725 = vpow.pop %v724
    %v726 = vmul.f32 %v717, 1.442695
    %v727 = vpow.pop %v726
    %v728 = vmul.f32 %v718, 1.442695
    %v729 = vpow.pop %v728
    %v730 = vmul.f32 %v719, 1.442695
    %v731 = vpow.pop %v730
    %v732 = vmul.f32 %v720, 1.442695
    %v733 = vpow.pop %v732
    %v734 = vmul.f32 %v721, 1.442695
    %v735 = vpow.pop %v734
    %v736 = vmul.f32 %v722, 1.442695
    %v737 = vpow.pop %v736
    %v738 = vmul.f32 %v723, 1.442695
    %v739 = vpow.pop %v738
    %v740 = vadd.f32 %v725, 1.0
    %v741 = vadd.f32 %v727, 1.0
    %v742 = vadd.f32 %v729, 1.0
    %v743 = vadd.f32 %v731, 1.0
    %v744 = vadd.f32 %v733, 1.0
    %v745 = vadd.f32 %v735, 1.0
    %v746 = vadd.f32 %v737, 1.0
    %v747 = vadd.f32 %v739, 1.0
    %v748 = vrcp.pop %v740
    %v749 = vmul.f32 1.0, %v748
    %v750 = vrcp.pop %v741
    %v751 = vmul.f32 1.0, %v750
    %v752 = vrcp.pop %v742
    %v753 = vmul.f32 1.0, %v752
    %v754 = vrcp.pop %v743
    %v755 = vmul.f32 1.0, %v754
    %v756 = vrcp.pop %v744
    %v757 = vmul.f32 1.0, %v756
    %v758 = vrcp.pop %v745
    %v759 = vmul.f32 1.0, %v758
    %v760 = vrcp.pop %v746
    %v761 = vmul.f32 1.0, %v760
    %v762 = vrcp.pop %v747
    %v763 = vmul.f32 1.0, %v762
    %772 = vrot.lane.b32.xlu0 %v749, 96
    %v773 = vpop.permute.xlu0 %772
    %774 = vrot.lane.b32.xlu0 %v751, 96
    %v775 = vpop.permute.xlu0 %774
    %776 = vrot.lane.b32.xlu0 %v753, 96
    %v777 = vpop.permute.xlu0 %776
    %778 = vrot.lane.b32.xlu0 %v755, 96
    %v779 = vpop.permute.xlu0 %778
    %780 = vrot.lane.b32.xlu0 %v757, 96
    %v781 = vpop.permute.xlu0 %780
    %782 = vrot.lane.b32.xlu0 %v759, 96
    %v783 = vpop.permute.xlu0 %782
    %784 = vrot.lane.b32.xlu0 %v761, 96
    %v785 = vpop.permute.xlu0 %784
    %786 = vrot.lane.b32.xlu0 %v763, 96
    %v787 = vpop.permute.xlu0 %786
    %v796 = vmul.f32 %v708, %v773
    %v797 = vmul.f32 %v709, %v775
    %v798 = vmul.f32 %v710, %v777
    %v799 = vmul.f32 %v711, %v779
    %v800 = vmul.f32 %v712, %v781
    %v801 = vmul.f32 %v713, %v783
    %v802 = vmul.f32 %v714, %v785
    %v803 = vmul.f32 %v715, %v787
    %v804 = vld [vmem:[#allocation4 + $0x68] sm:$0xff]
    %v805 = vld [vmem:[#allocation4 + $0x70] sm:$0xff]
    %v806 = vld [vmem:[#allocation4 + $0x78] sm:$0xff]
    %v807 = vld [vmem:[#allocation4 + $0x80] sm:$0xff]
    %v808 = vld [vmem:[#allocation4 + $0x138] sm:$0x1]
    %v809 = vlaneseq
    %v810 = vshrl.u32 %v809, 7
    %v811 = vsub.s32 0, %v810
    %v812 = vrot.slane %v808, %v811
    %v814 = vsel %vm290, %v796, 0
    %v817 = vsel %vm290, %v797, 0
    %v820 = vsel %vm290, %v798, 0
    %v823 = vsel %vm290, %v799, 0
    %v826 = vsel %vm290, %v800, 0
    %v829 = vsel %vm290, %v801, 0
    %v832 = vsel %vm290, %v802, 0
    %v835 = vsel %vm290, %v803, 0
    %837 = vmatprep.subr.mxu0 0.0
    %838 = vmatpush1.msra.mxu0 %v804
    %839 = vmatprep.subr.mxu0 0.0
    %840 = vmatpush1.msra.mxu0 %v805
    %841 = vmatprep.subr.mxu0 0.0
    %842 = vmatpush1.msra.mxu0 %v806
    %843 = vmatprep.subr.mxu0 0.0
    %844 = vmatpush1.msra.mxu0 %v807
    %845 = vmatprep.subr.mxu0 0.0
    %846 = vmatpush1.msra.mxu0 0.0
    %847 = vmatprep.subr.mxu0 0.0
    %848 = vmatpush1.msra.mxu0 0.0
    %849 = vmatprep.subr.mxu0 0.0
    %850 = vmatpush1.msra.mxu0 0.0
    %851 = vmatprep.subr.mxu0 0.0
    %852 = vmatpush1.msra.mxu0 0.0
    %853 = vmatprep.subr.mxu0 0.0
    %854 = vmatpush1.msra.mxu0 0.0
    %855 = vmatprep.subr.mxu0 0.0
    %856 = vmatpush1.msra.mxu0 0.0
    %857 = vmatprep.subr.mxu0 0.0
    %858 = vmatpush1.msra.mxu0 0.0
    %859 = vmatprep.subr.mxu0 0.0
    %860 = vmatpush1.msra.mxu0 0.0
    %861 = vmatprep.subr.mxu0 0.0
    %862 = vmatpush1.msra.mxu0 0.0
    %863 = vmatprep.subr.mxu0 0.0
    %864 = vmatpush1.msra.mxu0 0.0
    %865 = vmatprep.subr.mxu0 0.0
    %866 = vmatpush1.msra.mxu0 0.0
    %867 = vmatprep.subr.mxu0 0.0
    %868 = vmatpush1.msra.mxu0 0.0
    %869 = vmatprep.subr.mxu0 0.0
    %870 = vmatpush1.msra.mxu0 0.0
    %871 = vmatprep.subr.mxu0 0.0
    %872 = vmatpush1.msra.mxu0 0.0
    %873 = vmatprep.subr.mxu0 0.0
    %874 = vmatpush1.msra.mxu0 0.0
    %875 = vmatprep.subr.mxu0 0.0
    %876 = vmatpush1.msra.mxu0 0.0
    %877 = vmatprep.subr.mxu0 0.0
    %878 = vmatpush1.msra.mxu0 0.0
    %879 = vmatprep.subr.mxu0 0.0
    %880 = vmatpush1.msra.mxu0 0.0
    %881 = vmatprep.subr.mxu0 0.0
    %882 = vmatpush1.msra.mxu0 0.0
    %883 = vmatprep.subr.mxu0 0.0
    %884 = vmatpush1.msra.mxu0 0.0
    %885 = vmatprep.subr.mxu0 0.0
    %886 = vmatpush1.msra.mxu0 0.0
    %887 = vmatprep.subr.mxu0 0.0
    %888 = vmatpush1.msra.mxu0 0.0
    %889 = vmatprep.subr.mxu0 0.0
    %890 = vmatpush1.msra.mxu0 0.0
    %891 = vmatprep.subr.mxu0 0.0
    %892 = vmatpush1.msra.mxu0 0.0
    %893 = vmatprep.subr.mxu0 0.0
    %894 = vmatpush1.msra.mxu0 0.0
    %895 = vmatprep.subr.mxu0 0.0
    %896 = vmatpush1.msra.mxu0 0.0
    %897 = vmatprep.subr.mxu0 0.0
    %898 = vmatpush1.msra.mxu0 0.0
    %899 = vmatprep.subr.mxu0 0.0
    %900 = vmatpush1.msra.mxu0 0.0
    %901 = vmatprep.mubr.f32.mxu0 0.0
    %902 = vmatmul.mubr.f32.gmra.mrb[0].mxu0 %v814
    %v903 = vpop.f32.mrb[0].mxu0
    %v904 = vadd.f32 %v812, %v903
    %v905 = vpop.f32.mrb[0].mxu0
    %906 = vmatprep.mubr.f32.mxu0 0.0
    %907 = vmatmul.mubr.f32.gmra.mrb[0].mxu0 %v817
    %v908 = vpop.f32.mrb[0].mxu0
    %v909 = vadd.f32 %v812, %v908
    %v910 = vpop.f32.mrb[0].mxu0
    %911 = vmatprep.mubr.f32.mxu0 0.0
    %912 = vmatmul.mubr.f32.gmra.mrb[0].mxu0 %v820
    %v913 = vpop.f32.mrb[0].mxu0
    %v914 = vadd.f32 %v812, %v913
    %v915 = vpop.f32.mrb[0].mxu0
    %916 = vmatprep.mubr.f32.mxu0 0.0
    %917 = vmatmul.mubr.f32.gmra.mrb[0].mxu0 %v823
    %v918 = vpop.f32.mrb[0].mxu0
    %v919 = vadd.f32 %v812, %v918
    %v920 = vpop.f32.mrb[0].mxu0
    %921 = vmatprep.mubr.f32.mxu0 0.0
    %922 = vmatmul.mubr.f32.gmra.mrb[0].mxu0 %v826
    %v923 = vpop.f32.mrb[0].mxu0
    %v924 = vadd.f32 %v812, %v923
    %v925 = vpop.f32.mrb[0].mxu0
    %926 = vmatprep.mubr.f32.mxu0 0.0
    %927 = vmatmul.mubr.f32.gmra.mrb[0].mxu0 %v829
    %v928 = vpop.f32.mrb[0].mxu0
    %v929 = vadd.f32 %v812, %v928
    %v930 = vpop.f32.mrb[0].mxu0
    %931 = vmatprep.mubr.f32.mxu0 0.0
    %932 = vmatmul.mubr.f32.gmra.mrb[0].mxu0 %v832
    %v933 = vpop.f32.mrb[0].mxu0
    %v934 = vadd.f32 %v812, %v933
    %v935 = vpop.f32.mrb[0].mxu0
    %936 = vmatprep.mubr.f32.mxu0 0.0
    %937 = vmatmul.mubr.f32.gmra.mrb[0].mxu0 %v835
    %v938 = vpop.f32.mrb[0].mxu0
    %v939 = vadd.f32 %v812, %v938
    %v940 = vpop.f32.mrb[0].mxu0
    %941 = vdwg.mxu0
    %v942 = vadd.f32 %v251, %v904
    %v943 = vadd.f32 %v252, %v909
    %v944 = vadd.f32 %v253, %v914
    %v945 = vadd.f32 %v254, %v919
    %v946 = vadd.f32 %v255, %v924
    %v947 = vadd.f32 %v256, %v929
    %v948 = vadd.f32 %v257, %v934
    %v949 = vadd.f32 %v258, %v939
    %v950 = vmul.f32 %v942, %v82
    %v951 = vmul.f32 %v943, %v87
    %v952 = vmul.f32 %v944, %v92
    %v953 = vmul.f32 %v945, %v97
    %v954 = vmul.f32 %v946, %v102
    %v955 = vmul.f32 %v947, %v107
    %v956 = vmul.f32 %v948, %v112
    %v957 = vmul.f32 %v949, %v117
    %v958 = vadd.f32 %v904, 0.0
    %v959 = vadd.f32 %v909, 0.0
    %v960 = vadd.f32 %v914, 0.0
    %v961 = vadd.f32 %v919, 0.0
    %v962 = vadd.f32 %v924, 0.0
    %v963 = vadd.f32 %v929, 0.0
    %v964 = vadd.f32 %v934, 0.0
    %v965 = vadd.f32 %v939, 0.0
    %v966 = vld [vmem:[#allocation4 + $0x140] sm:$0x1]
    %v967 = vld [vmem:[#allocation4 + $0x88] sm:$0xff]
    %v968 = vld [vmem:[#allocation4 + $0x90] sm:$0xff]
    %v969 = vld [vmem:[#allocation4 + $0x98] sm:$0xff]
    %v970 = vld [vmem:[#allocation4 + $0xa0] sm:$0xff]
    %vm979 = vcmask 1041408
    %v980 = vrot.slane 0.0, 6
    %v981 = vrot.slane %v950, 6
    %v982 = vsel %vm979, %v980, %v981
    %v983 = vrot.slane %v951, 6
    %v984 = vsel %vm979, %v981, %v983
    %v985 = vrot.slane %v952, 6
    %v986 = vsel %vm979, %v983, %v985
    %v987 = vrot.slane %v953, 6
    %v988 = vsel %vm979, %v985, %v987
    %v989 = vrot.slane %v954, 6
    %v990 = vsel %vm979, %v987, %v989
    %v991 = vrot.slane %v955, 6
    %v992 = vsel %vm979, %v989, %v991
    %v993 = vrot.slane %v956, 6
    %v994 = vsel %vm979, %v991, %v993
    %v995 = vrot.slane %v957, 6
    %v996 = vsel %vm979, %v993, %v995
    %v997 = vsel %vm290, %v982, 0
    %v999 = vsel %vm290, %v984, 0
    %v1001 = vsel %vm290, %v986, 0
    %v1003 = vsel %vm290, %v988, 0
    %v1005 = vsel %vm290, %v990, 0
    %v1007 = vsel %vm290, %v992, 0
    %v1009 = vsel %vm290, %v994, 0
    %v1011 = vsel %vm290, %v996, 0
    %1013 = vmatprep.subr.mxu0 0.0
    %1014 = vmatpush1.msra.mxu0 %v967
    %1015 = vmatprep.subr.mxu0 0.0
    %1016 = vmatpush1.msra.mxu0 %v968
    %1017 = vmatprep.subr.mxu0 0.0
    %1018 = vmatpush1.msra.mxu0 %v969
    %1019 = vmatprep.subr.mxu0 0.0
    %1020 = vmatpush1.msra.mxu0 %v970
    %1021 = vmatprep.subr.mxu0 0.0
    %1022 = vmatpush1.msra.mxu0 0.0
    %1023 = vmatprep.subr.mxu0 0.0
    %1024 = vmatpush1.msra.mxu0 0.0
    %1025 = vmatprep.subr.mxu0 0.0
    %1026 = vmatpush1.msra.mxu0 0.0
    %1027 = vmatprep.subr.mxu0 0.0
    %1028 = vmatpush1.msra.mxu0 0.0
    %1029 = vmatprep.subr.mxu0 0.0
    %1030 = vmatpush1.msra.mxu0 0.0
    %1031 = vmatprep.subr.mxu0 0.0
    %1032 = vmatpush1.msra.mxu0 0.0
    %1033 = vmatprep.subr.mxu0 0.0
    %1034 = vmatpush1.msra.mxu0 0.0
    %1035 = vmatprep.subr.mxu0 0.0
    %1036 = vmatpush1.msra.mxu0 0.0
    %1037 = vmatprep.subr.mxu0 0.0
    %1038 = vmatpush1.msra.mxu0 0.0
    %1039 = vmatprep.subr.mxu0 0.0
    %1040 = vmatpush1.msra.mxu0 0.0
    %1041 = vmatprep.subr.mxu0 0.0
    %1042 = vmatpush1.msra.mxu0 0.0
    %1043 = vmatprep.subr.mxu0 0.0
    %1044 = vmatpush1.msra.mxu0 0.0
    %1045 = vmatprep.subr.mxu0 0.0
    %1046 = vmatpush1.msra.mxu0 0.0
    %1047 = vmatprep.subr.mxu0 0.0
    %1048 = vmatpush1.msra.mxu0 0.0
    %1049 = vmatprep.subr.mxu0 0.0
    %1050 = vmatpush1.msra.mxu0 0.0
    %1051 = vmatprep.subr.mxu0 0.0
    %1052 = vmatpush1.msra.mxu0 0.0
    %1053 = vmatprep.subr.mxu0 0.0
    %1054 = vmatpush1.msra.mxu0 0.0
    %1055 = vmatprep.subr.mxu0 0.0
    %1056 = vmatpush1.msra.mxu0 0.0
    %1057 = vmatprep.subr.mxu0 0.0
    %1058 = vmatpush1.msra.mxu0 0.0
    %1059 = vmatprep.subr.mxu0 0.0
    %1060 = vmatpush1.msra.mxu0 0.0
    %1061 = vmatprep.subr.mxu0 0.0
    %1062 = vmatpush1.msra.mxu0 0.0
    %1063 = vmatprep.subr.mxu0 0.0
    %1064 = vmatpush1.msra.mxu0 0.0
    %1065 = vmatprep.subr.mxu0 0.0
    %1066 = vmatpush1.msra.mxu0 0.0
    %1067 = vmatprep.subr.mxu0 0.0
    %1068 = vmatpush1.msra.mxu0 0.0
    %1069 = vmatprep.subr.mxu0 0.0
    %1070 = vmatpush1.msra.mxu0 0.0
    %1071 = vmatprep.subr.mxu0 0.0
    %1072 = vmatpush1.msra.mxu0 0.0
    %1073 = vmatprep.subr.mxu0 0.0
    %1074 = vmatpush1.msra.mxu0 0.0
    %1075 = vmatprep.subr.mxu0 0.0
    %1076 = vmatpush1.msra.mxu0 0.0
    %1077 = vmatprep.mubr.f32.mxu0 0.0
    %1078 = vmatmul.mubr.f32.gmra.mrb[0].mxu0 %v997
    %v1079 = vpop.f32.mrb[0].mxu0
    %v1080 = vadd.f32 0.0, %v1079
    %v1081 = vpop.f32.mrb[0].mxu0
    %1082 = vmatprep.mubr.f32.mxu0 0.0
    %1083 = vmatmul.mubr.f32.gmra.mrb[0].mxu0 %v999
    %v1084 = vpop.f32.mrb[0].mxu0
    %v1085 = vadd.f32 0.0, %v1084
    %v1086 = vpop.f32.mrb[0].mxu0
    %1087 = vmatprep.mubr.f32.mxu0 0.0
    %1088 = vmatmul.mubr.f32.gmra.mrb[0].mxu0 %v1001
    %v1089 = vpop.f32.mrb[0].mxu0
    %v1090 = vadd.f32 0.0, %v1089
    %v1091 = vpop.f32.mrb[0].mxu0
    %1092 = vmatprep.mubr.f32.mxu0 0.0
    %1093 = vmatmul.mubr.f32.gmra.mrb[0].mxu0 %v1003
    %v1094 = vpop.f32.mrb[0].mxu0
    %v1095 = vadd.f32 0.0, %v1094
    %v1096 = vpop.f32.mrb[0].mxu0
    %1097 = vmatprep.mubr.f32.mxu0 0.0
    %1098 = vmatmul.mubr.f32.gmra.mrb[0].mxu0 %v1005
    %v1099 = vpop.f32.mrb[0].mxu0
    %v1100 = vadd.f32 0.0, %v1099
    %v1101 = vpop.f32.mrb[0].mxu0
    %1102 = vmatprep.mubr.f32.mxu0 0.0
    %1103 = vmatmul.mubr.f32.gmra.mrb[0].mxu0 %v1007
    %v1104 = vpop.f32.mrb[0].mxu0
    %v1105 = vadd.f32 0.0, %v1104
    %v1106 = vpop.f32.mrb[0].mxu0
    %1107 = vmatprep.mubr.f32.mxu0 0.0
    %1108 = vmatmul.mubr.f32.gmra.mrb[0].mxu0 %v1009
    %v1109 = vpop.f32.mrb[0].mxu0
    %v1110 = vadd.f32 0.0, %v1109
    %v1111 = vpop.f32.mrb[0].mxu0
    %1112 = vmatprep.mubr.f32.mxu0 0.0
    %1113 = vmatmul.mubr.f32.gmra.mrb[0].mxu0 %v1011
    %v1114 = vpop.f32.mrb[0].mxu0
    %v1115 = vadd.f32 0.0, %v1114
    %v1116 = vpop.f32.mrb[0].mxu0
    %1117 = vdwg.mxu0
    %v1118 = vlaneseq
    %v1119 = vshrl.u32 %v1118, 7
    %v1120 = vsub.s32 0, %v1119
    %v1121 = vrot.slane %v966, %v1120
    %v1122 = vadd.f32 %v1121, %v1080
    %v1123 = vadd.f32 %v1121, %v1085
    %v1124 = vadd.f32 %v1121, %v1090
    %v1125 = vadd.f32 %v1121, %v1095
    %v1126 = vadd.f32 %v1121, %v1100
    %v1127 = vadd.f32 %v1121, %v1105
    %v1128 = vadd.f32 %v1121, %v1110
    %v1129 = vadd.f32 %v1121, %v1115
    %v1130 = vld [vmem:[#allocation4 + $0xa8] sm:$0xff]
    %v1131 = vld [vmem:[#allocation4 + $0xb0] sm:$0xff]
    %v1132 = vld [vmem:[#allocation4 + $0xb8] sm:$0xff]
    %v1133 = vld [vmem:[#allocation4 + $0xc0] sm:$0xff]
    %v1134 = vsel %vm290, %v950, 0
    %v1136 = vsel %vm290, %v951, 0
    %v1138 = vsel %vm290, %v952, 0
    %v1140 = vsel %vm290, %v953, 0
    %v1142 = vsel %vm290, %v954, 0
    %v1144 = vsel %vm290, %v955, 0
    %v1146 = vsel %vm290, %v956, 0
    %v1148 = vsel %vm290, %v957, 0
    %1150 = vmatprep.subr.mxu0 0.0
    %1151 = vmatpush1.msra.mxu0 %v1130
    %1152 = vmatprep.subr.mxu0 0.0
    %1153 = vmatpush1.msra.mxu0 %v1131
    %1154 = vmatprep.subr.mxu0 0.0
    %1155 = vmatpush1.msra.mxu0 %v1132
    %1156 = vmatprep.subr.mxu0 0.0
    %1157 = vmatpush1.msra.mxu0 %v1133
    %1158 = vmatprep.subr.mxu0 0.0
    %1159 = vmatpush1.msra.mxu0 0.0
    %1160 = vmatprep.subr.mxu0 0.0
    %1161 = vmatpush1.msra.mxu0 0.0
    %1162 = vmatprep.subr.mxu0 0.0
    %1163 = vmatpush1.msra.mxu0 0.0
    %1164 = vmatprep.subr.mxu0 0.0
    %1165 = vmatpush1.msra.mxu0 0.0
    %1166 = vmatprep.subr.mxu0 0.0
    %1167 = vmatpush1.msra.mxu0 0.0
    %1168 = vmatprep.subr.mxu0 0.0
    %1169 = vmatpush1.msra.mxu0 0.0
    %1170 = vmatprep.subr.mxu0 0.0
    %1171 = vmatpush1.msra.mxu0 0.0
    %1172 = vmatprep.subr.mxu0 0.0
    %1173 = vmatpush1.msra.mxu0 0.0
    %1174 = vmatprep.subr.mxu0 0.0
    %1175 = vmatpush1.msra.mxu0 0.0
    %1176 = vmatprep.subr.mxu0 0.0
    %1177 = vmatpush1.msra.mxu0 0.0
    %1178 = vmatprep.subr.mxu0 0.0
    %1179 = vmatpush1.msra.mxu0 0.0
    %1180 = vmatprep.subr.mxu0 0.0
    %1181 = vmatpush1.msra.mxu0 0.0
    %1182 = vmatprep.subr.mxu0 0.0
    %1183 = vmatpush1.msra.mxu0 0.0
    %1184 = vmatprep.subr.mxu0 0.0
    %1185 = vmatpush1.msra.mxu0 0.0
    %1186 = vmatprep.subr.mxu0 0.0
    %1187 = vmatpush1.msra.mxu0 0.0
    %1188 = vmatprep.subr.mxu0 0.0
    %1189 = vmatpush1.msra.mxu0 0.0
    %1190 = vmatprep.subr.mxu0 0.0
    %1191 = vmatpush1.msra.mxu0 0.0
    %1192 = vmatprep.subr.mxu0 0.0
    %1193 = vmatpush1.msra.mxu0 0.0
    %1194 = vmatprep.subr.mxu0 0.0
    %1195 = vmatpush1.msra.mxu0 0.0
    %1196 = vmatprep.subr.mxu0 0.0
    %1197 = vmatpush1.msra.mxu0 0.0
    %1198 = vmatprep.subr.mxu0 0.0
    %1199 = vmatpush1.msra.mxu0 0.0
    %1200 = vmatprep.subr.mxu0 0.0
    %1201 = vmatpush1.msra.mxu0 0.0
    %1202 = vmatprep.subr.mxu0 0.0
    %1203 = vmatpush1.msra.mxu0 0.0
    %1204 = vmatprep.subr.mxu0 0.0
    %1205 = vmatpush1.msra.mxu0 0.0
    %1206 = vmatprep.subr.mxu0 0.0
    %1207 = vmatpush1.msra.mxu0 0.0
    %1208 = vmatprep.subr.mxu0 0.0
    %1209 = vmatpush1.msra.mxu0 0.0
    %1210 = vmatprep.subr.mxu0 0.0
    %1211 = vmatpush1.msra.mxu0 0.0
    %1212 = vmatprep.subr.mxu0 0.0
    %1213 = vmatpush1.msra.mxu0 0.0
    %1214 = vmatprep.mubr.f32.mxu0 0.0
    %1215 = vmatmul.mubr.f32.gmra.mrb[0].mxu0 %v1134
    %v1216 = vpop.f32.mrb[0].mxu0
    %v1217 = vadd.f32 0.0, %v1216
    %v1218 = vpop.f32.mrb[0].mxu0
    %1219 = vmatprep.mubr.f32.mxu0 0.0
    %1220 = vmatmul.mubr.f32.gmra.mrb[0].mxu0 %v1136
    %v1221 = vpop.f32.mrb[0].mxu0
    %v1222 = vadd.f32 0.0, %v1221
    %v1223 = vpop.f32.mrb[0].mxu0
    %1224 = vmatprep.mubr.f32.mxu0 0.0
    %1225 = vmatmul.mubr.f32.gmra.mrb[0].mxu0 %v1138
    %v1226 = vpop.f32.mrb[0].mxu0
    %v1227 = vadd.f32 0.0, %v1226
    %v1228 = vpop.f32.mrb[0].mxu0
    %1229 = vmatprep.mubr.f32.mxu0 0.0
    %1230 = vmatmul.mubr.f32.gmra.mrb[0].mxu0 %v1140
    %v1231 = vpop.f32.mrb[0].mxu0
    %v1232 = vadd.f32 0.0, %v1231
    %v1233 = vpop.f32.mrb[0].mxu0
    %1234 = vmatprep.mubr.f32.mxu0 0.0
    %1235 = vmatmul.mubr.f32.gmra.mrb[0].mxu0 %v1142
    %v1236 = vpop.f32.mrb[0].mxu0
    %v1237 = vadd.f32 0.0, %v1236
    %v1238 = vpop.f32.mrb[0].mxu0
    %1239 = vmatprep.mubr.f32.mxu0 0.0
    %1240 = vmatmul.mubr.f32.gmra.mrb[0].mxu0 %v1144
    %v1241 = vpop.f32.mrb[0].mxu0
    %v1242 = vadd.f32 0.0, %v1241
    %v1243 = vpop.f32.mrb[0].mxu0
    %1244 = vmatprep.mubr.f32.mxu0 0.0
    %1245 = vmatmul.mubr.f32.gmra.mrb[0].mxu0 %v1146
    %v1246 = vpop.f32.mrb[0].mxu0
    %v1247 = vadd.f32 0.0, %v1246
    %v1248 = vpop.f32.mrb[0].mxu0
    %1249 = vmatprep.mubr.f32.mxu0 0.0
    %1250 = vmatmul.mubr.f32.gmra.mrb[0].mxu0 %v1148
    %v1251 = vpop.f32.mrb[0].mxu0
    %v1252 = vadd.f32 0.0, %v1251
    %v1253 = vpop.f32.mrb[0].mxu0
    %1254 = vdwg.mxu0
    %v1255 = vadd.f32 %v1122, %v1217
    %v1256 = vadd.f32 %v1123, %v1222
    %v1257 = vadd.f32 %v1124, %v1227
    %v1258 = vadd.f32 %v1125, %v1232
    %v1259 = vadd.f32 %v1126, %v1237
    %v1260 = vadd.f32 %v1127, %v1242
    %v1261 = vadd.f32 %v1128, %v1247
    %v1262 = vadd.f32 %v1129, %v1252
    %v1263 = vld [vmem:[#allocation4 + $0xc8] sm:$0xff]
    %v1264 = vld [vmem:[#allocation4 + $0xd0] sm:$0xff]
    %v1265 = vld [vmem:[#allocation4 + $0xd8] sm:$0xff]
    %v1266 = vld [vmem:[#allocation4 + $0xe0] sm:$0xff]
    %vm1267 = vcmask 1045504
    %v1268 = vrot.slane %v950, 2
    %v1269 = vrot.slane %v951, 2
    %v1270 = vsel %vm1267, %v1268, %v1269
    %v1271 = vrot.slane %v952, 2
    %v1272 = vsel %vm1267, %v1269, %v1271
    %v1273 = vrot.slane %v953, 2
    %v1274 = vsel %vm1267, %v1271, %v1273
    %v1275 = vrot.slane %v954, 2
    %v1276 = vsel %vm1267, %v1273, %v1275
    %v1277 = vrot.slane %v955, 2
    %v1278 = vsel %vm1267, %v1275, %v1277
    %v1279 = vrot.slane %v956, 2
    %v1280 = vsel %vm1267, %v1277, %v1279
    %v1281 = vrot.slane %v957, 2
    %v1282 = vsel %vm1267, %v1279, %v1281
    %v1283 = vrot.slane 0.0, 2
    %v1284 = vsel %vm1267, %v1281, %v1283
    %v1285 = vsel %vm290, %v1270, 0
    %v1287 = vsel %vm290, %v1272, 0
    %v1289 = vsel %vm290, %v1274, 0
    %v1291 = vsel %vm290, %v1276, 0
    %v1293 = vsel %vm290, %v1278, 0
    %v1295 = vsel %vm290, %v1280, 0
    %v1297 = vsel %vm290, %v1282, 0
    %v1299 = vsel %vm290, %v1284, 0
    %1301 = vmatprep.subr.mxu0 0.0
    %1302 = vmatpush1.msra.mxu0 %v1263
    %1303 = vmatprep.subr.mxu0 0.0
    %1304 = vmatpush1.msra.mxu0 %v1264
    %1305 = vmatprep.subr.mxu0 0.0
    %1306 = vmatpush1.msra.mxu0 %v1265
    %1307 = vmatprep.subr.mxu0 0.0
    %1308 = vmatpush1.msra.mxu0 %v1266
    %1309 = vmatprep.subr.mxu0 0.0
    %1310 = vmatpush1.msra.mxu0 0.0
    %1311 = vmatprep.subr.mxu0 0.0
    %1312 = vmatpush1.msra.mxu0 0.0
    %1313 = vmatprep.subr.mxu0 0.0
    %1314 = vmatpush1.msra.mxu0 0.0
    %1315 = vmatprep.subr.mxu0 0.0
    %1316 = vmatpush1.msra.mxu0 0.0
    %1317 = vmatprep.subr.mxu0 0.0
    %1318 = vmatpush1.msra.mxu0 0.0
    %1319 = vmatprep.subr.mxu0 0.0
    %1320 = vmatpush1.msra.mxu0 0.0
    %1321 = vmatprep.subr.mxu0 0.0
    %1322 = vmatpush1.msra.mxu0 0.0
    %1323 = vmatprep.subr.mxu0 0.0
    %1324 = vmatpush1.msra.mxu0 0.0
    %1325 = vmatprep.subr.mxu0 0.0
    %1326 = vmatpush1.msra.mxu0 0.0
    %1327 = vmatprep.subr.mxu0 0.0
    %1328 = vmatpush1.msra.mxu0 0.0
    %1329 = vmatprep.subr.mxu0 0.0
    %1330 = vmatpush1.msra.mxu0 0.0
    %1331 = vmatprep.subr.mxu0 0.0
    %1332 = vmatpush1.msra.mxu0 0.0
    %1333 = vmatprep.subr.mxu0 0.0
    %1334 = vmatpush1.msra.mxu0 0.0
    %1335 = vmatprep.subr.mxu0 0.0
    %1336 = vmatpush1.msra.mxu0 0.0
    %1337 = vmatprep.subr.mxu0 0.0
    %1338 = vmatpush1.msra.mxu0 0.0
    %1339 = vmatprep.subr.mxu0 0.0
    %1340 = vmatpush1.msra.mxu0 0.0
    %1341 = vmatprep.subr.mxu0 0.0
    %1342 = vmatpush1.msra.mxu0 0.0
    %1343 = vmatprep.subr.mxu0 0.0
    %1344 = vmatpush1.msra.mxu0 0.0
    %1345 = vmatprep.subr.mxu0 0.0
    %1346 = vmatpush1.msra.mxu0 0.0
    %1347 = vmatprep.subr.mxu0 0.0
    %1348 = vmatpush1.msra.mxu0 0.0
    %1349 = vmatprep.subr.mxu0 0.0
    %1350 = vmatpush1.msra.mxu0 0.0
    %1351 = vmatprep.subr.mxu0 0.0
    %1352 = vmatpush1.msra.mxu0 0.0
    %1353 = vmatprep.subr.mxu0 0.0
    %1354 = vmatpush1.msra.mxu0 0.0
    %1355 = vmatprep.subr.mxu0 0.0
    %1356 = vmatpush1.msra.mxu0 0.0
    %1357 = vmatprep.subr.mxu0 0.0
    %1358 = vmatpush1.msra.mxu0 0.0
    %1359 = vmatprep.subr.mxu0 0.0
    %1360 = vmatpush1.msra.mxu0 0.0
    %1361 = vmatprep.subr.mxu0 0.0
    %1362 = vmatpush1.msra.mxu0 0.0
    %1363 = vmatprep.subr.mxu0 0.0
    %1364 = vmatpush1.msra.mxu0 0.0
    %1365 = vmatprep.mubr.f32.mxu0 0.0
    %1366 = vmatmul.mubr.f32.gmra.mrb[0].mxu0 %v1285
    %v1367 = vpop.f32.mrb[0].mxu0
    %v1368 = vadd.f32 0.0, %v1367
    %v1369 = vpop.f32.mrb[0].mxu0
    %1370 = vmatprep.mubr.f32.mxu0 0.0
    %1371 = vmatmul.mubr.f32.gmra.mrb[0].mxu0 %v1287
    %v1372 = vpop.f32.mrb[0].mxu0
    %v1373 = vadd.f32 0.0, %v1372
    %v1374 = vpop.f32.mrb[0].mxu0
    %1375 = vmatprep.mubr.f32.mxu0 0.0
    %1376 = vmatmul.mubr.f32.gmra.mrb[0].mxu0 %v1289
    %v1377 = vpop.f32.mrb[0].mxu0
    %v1378 = vadd.f32 0.0, %v1377
    %v1379 = vpop.f32.mrb[0].mxu0
    %1380 = vmatprep.mubr.f32.mxu0 0.0
    %1381 = vmatmul.mubr.f32.gmra.mrb[0].mxu0 %v1291
    %v1382 = vpop.f32.mrb[0].mxu0
    %v1383 = vadd.f32 0.0, %v1382
    %v1384 = vpop.f32.mrb[0].mxu0
    %1385 = vmatprep.mubr.f32.mxu0 0.0
    %1386 = vmatmul.mubr.f32.gmra.mrb[0].mxu0 %v1293
    %v1387 = vpop.f32.mrb[0].mxu0
    %v1388 = vadd.f32 0.0, %v1387
    %v1389 = vpop.f32.mrb[0].mxu0
    %1390 = vmatprep.mubr.f32.mxu0 0.0
    %1391 = vmatmul.mubr.f32.gmra.mrb[0].mxu0 %v1295
    %v1392 = vpop.f32.mrb[0].mxu0
    %v1393 = vadd.f32 0.0, %v1392
    %v1394 = vpop.f32.mrb[0].mxu0
    %1395 = vmatprep.mubr.f32.mxu0 0.0
    %1396 = vmatmul.mubr.f32.gmra.mrb[0].mxu0 %v1297
    %v1397 = vpop.f32.mrb[0].mxu0
    %v1398 = vadd.f32 0.0, %v1397
    %v1399 = vpop.f32.mrb[0].mxu0
    %1400 = vmatprep.mubr.f32.mxu0 0.0
    %1401 = vmatmul.mubr.f32.gmra.mrb[0].mxu0 %v1299
    %v1402 = vpop.f32.mrb[0].mxu0
    %v1403 = vadd.f32 0.0, %v1402
    %v1404 = vpop.f32.mrb[0].mxu0
    %1405 = vdwg.mxu0
    %v1406 = vadd.f32 %v1255, %v1368
    %v1407 = vadd.f32 %v1256, %v1373
    %v1408 = vadd.f32 %v1257, %v1378
    %v1409 = vadd.f32 %v1258, %v1383
    %v1410 = vadd.f32 %v1259, %v1388
    %v1411 = vadd.f32 %v1260, %v1393
    %v1412 = vadd.f32 %v1261, %v1398
    %v1413 = vadd.f32 %v1262, %v1403
    %v1414 = vtanh.pop %v1406
    %v1415 = vtanh.pop %v1407
    %v1416 = vtanh.pop %v1408
    %v1417 = vtanh.pop %v1409
    %v1418 = vtanh.pop %v1410
    %v1419 = vtanh.pop %v1411
    %v1420 = vtanh.pop %v1412
    %v1421 = vtanh.pop %v1413
    %v1422 = vxor.u32 %v1406, 2147483648
    %v1423 = vxor.u32 %v1407, 2147483648
    %v1424 = vxor.u32 %v1408, 2147483648
    %v1425 = vxor.u32 %v1409, 2147483648
    %v1426 = vxor.u32 %v1410, 2147483648
    %v1427 = vxor.u32 %v1411, 2147483648
    %v1428 = vxor.u32 %v1412, 2147483648
    %v1429 = vxor.u32 %v1413, 2147483648
    %v1430 = vmul.f32 %v1422, 1.442695
    %v1431 = vpow.pop %v1430
    %v1432 = vmul.f32 %v1423, 1.442695
    %v1433 = vpow.pop %v1432
    %v1434 = vmul.f32 %v1424, 1.442695
    %v1435 = vpow.pop %v1434
    %v1436 = vmul.f32 %v1425, 1.442695
    %v1437 = vpow.pop %v1436
    %v1438 = vmul.f32 %v1426, 1.442695
    %v1439 = vpow.pop %v1438
    %v1440 = vmul.f32 %v1427, 1.442695
    %v1441 = vpow.pop %v1440
    %v1442 = vmul.f32 %v1428, 1.442695
    %v1443 = vpow.pop %v1442
    %v1444 = vmul.f32 %v1429, 1.442695
    %v1445 = vpow.pop %v1444
    %v1446 = vadd.f32 %v1431, 1.0
    %v1447 = vadd.f32 %v1433, 1.0
    %v1448 = vadd.f32 %v1435, 1.0
    %v1449 = vadd.f32 %v1437, 1.0
    %v1450 = vadd.f32 %v1439, 1.0
    %v1451 = vadd.f32 %v1441, 1.0
    %v1452 = vadd.f32 %v1443, 1.0
    %v1453 = vadd.f32 %v1445, 1.0
    %v1454 = vrcp.pop %v1446
    %v1455 = vmul.f32 1.0, %v1454
    %v1456 = vrcp.pop %v1447
    %v1457 = vmul.f32 1.0, %v1456
    %v1458 = vrcp.pop %v1448
    %v1459 = vmul.f32 1.0, %v1458
    %v1460 = vrcp.pop %v1449
    %v1461 = vmul.f32 1.0, %v1460
    %v1462 = vrcp.pop %v1450
    %v1463 = vmul.f32 1.0, %v1462
    %v1464 = vrcp.pop %v1451
    %v1465 = vmul.f32 1.0, %v1464
    %v1466 = vrcp.pop %v1452
    %v1467 = vmul.f32 1.0, %v1466
    %v1468 = vrcp.pop %v1453
    %v1469 = vmul.f32 1.0, %v1468
    %1478 = vrot.lane.b32.xlu0 %v1455, 96
    %v1479 = vpop.permute.xlu0 %1478
    %1480 = vrot.lane.b32.xlu0 %v1457, 96
    %v1481 = vpop.permute.xlu0 %1480
    %1482 = vrot.lane.b32.xlu0 %v1459, 96
    %v1483 = vpop.permute.xlu0 %1482
    %1484 = vrot.lane.b32.xlu0 %v1461, 96
    %v1485 = vpop.permute.xlu0 %1484
    %1486 = vrot.lane.b32.xlu0 %v1463, 96
    %v1487 = vpop.permute.xlu0 %1486
    %1488 = vrot.lane.b32.xlu0 %v1465, 96
    %v1489 = vpop.permute.xlu0 %1488
    %1490 = vrot.lane.b32.xlu0 %v1467, 96
    %v1491 = vpop.permute.xlu0 %1490
    %1492 = vrot.lane.b32.xlu0 %v1469, 96
    %v1493 = vpop.permute.xlu0 %1492
    %v1502 = vmul.f32 %v1414, %v1479
    %v1503 = vmul.f32 %v1415, %v1481
    %v1504 = vmul.f32 %v1416, %v1483
    %v1505 = vmul.f32 %v1417, %v1485
    %v1506 = vmul.f32 %v1418, %v1487
    %v1507 = vmul.f32 %v1419, %v1489
    %v1508 = vmul.f32 %v1420, %v1491
    %v1509 = vmul.f32 %v1421, %v1493
    %v1510 = vld [vmem:[#allocation4 + $0xe8] sm:$0xff]
    %v1511 = vld [vmem:[#allocation4 + $0xf0] sm:$0xff]
    %v1512 = vld [vmem:[#allocation4 + $0xf8] sm:$0xff]
    %v1513 = vld [vmem:[#allocation4 + $0x100] sm:$0xff]
    %v1514 = vld [vmem:[#allocation4 + $0x148] sm:$0x1]
    %v1515 = vlaneseq
    %v1516 = vshrl.u32 %v1515, 7
    %v1517 = vsub.s32 0, %v1516
    %v1518 = vrot.slane %v1514, %v1517
    %v1520 = vsel %vm290, %v1502, 0
    %v1523 = vsel %vm290, %v1503, 0
    %v1526 = vsel %vm290, %v1504, 0
    %v1529 = vsel %vm290, %v1505, 0
    %v1532 = vsel %vm290, %v1506, 0
    %v1535 = vsel %vm290, %v1507, 0
    %v1538 = vsel %vm290, %v1508, 0
    %v1541 = vsel %vm290, %v1509, 0
    %1543 = vmatprep.subr.mxu0 0.0
    %1544 = vmatpush1.msra.mxu0 %v1510
    %1545 = vmatprep.subr.mxu0 0.0
    %1546 = vmatpush1.msra.mxu0 %v1511
    %1547 = vmatprep.subr.mxu0 0.0
    %1548 = vmatpush1.msra.mxu0 %v1512
    %1549 = vmatprep.subr.mxu0 0.0
    %1550 = vmatpush1.msra.mxu0 %v1513
    %1551 = vmatprep.subr.mxu0 0.0
    %1552 = vmatpush1.msra.mxu0 0.0
    %1553 = vmatprep.subr.mxu0 0.0
    %1554 = vmatpush1.msra.mxu0 0.0
    %1555 = vmatprep.subr.mxu0 0.0
    %1556 = vmatpush1.msra.mxu0 0.0
    %1557 = vmatprep.subr.mxu0 0.0
    %1558 = vmatpush1.msra.mxu0 0.0
    %1559 = vmatprep.subr.mxu0 0.0
    %1560 = vmatpush1.msra.mxu0 0.0
    %1561 = vmatprep.subr.mxu0 0.0
    %1562 = vmatpush1.msra.mxu0 0.0
    %1563 = vmatprep.subr.mxu0 0.0
    %1564 = vmatpush1.msra.mxu0 0.0
    %1565 = vmatprep.subr.mxu0 0.0
    %1566 = vmatpush1.msra.mxu0 0.0
    %1567 = vmatprep.subr.mxu0 0.0
    %1568 = vmatpush1.msra.mxu0 0.0
    %1569 = vmatprep.subr.mxu0 0.0
    %1570 = vmatpush1.msra.mxu0 0.0
    %1571 = vmatprep.subr.mxu0 0.0
    %1572 = vmatpush1.msra.mxu0 0.0
    %1573 = vmatprep.subr.mxu0 0.0
    %1574 = vmatpush1.msra.mxu0 0.0
    %1575 = vmatprep.subr.mxu0 0.0
    %1576 = vmatpush1.msra.mxu0 0.0
    %1577 = vmatprep.subr.mxu0 0.0
    %1578 = vmatpush1.msra.mxu0 0.0
    %1579 = vmatprep.subr.mxu0 0.0
    %1580 = vmatpush1.msra.mxu0 0.0
    %1581 = vmatprep.subr.mxu0 0.0
    %1582 = vmatpush1.msra.mxu0 0.0
    %1583 = vmatprep.subr.mxu0 0.0
    %1584 = vmatpush1.msra.mxu0 0.0
    %1585 = vmatprep.subr.mxu0 0.0
    %1586 = vmatpush1.msra.mxu0 0.0
    %1587 = vmatprep.subr.mxu0 0.0
    %1588 = vmatpush1.msra.mxu0 0.0
    %1589 = vmatprep.subr.mxu0 0.0
    %1590 = vmatpush1.msra.mxu0 0.0
    %1591 = vmatprep.subr.mxu0 0.0
    %1592 = vmatpush1.msra.mxu0 0.0
    %1593 = vmatprep.subr.mxu0 0.0
    %1594 = vmatpush1.msra.mxu0 0.0
    %1595 = vmatprep.subr.mxu0 0.0
    %1596 = vmatpush1.msra.mxu0 0.0
    %1597 = vmatprep.subr.mxu0 0.0
    %1598 = vmatpush1.msra.mxu0 0.0
    %1599 = vmatprep.subr.mxu0 0.0
    %1600 = vmatpush1.msra.mxu0 0.0
    %1601 = vmatprep.subr.mxu0 0.0
    %1602 = vmatpush1.msra.mxu0 0.0
    %1603 = vmatprep.subr.mxu0 0.0
    %1604 = vmatpush1.msra.mxu0 0.0
    %1605 = vmatprep.subr.mxu0 0.0
    %1606 = vmatpush1.msra.mxu0 0.0
    %1607 = vmatprep.mubr.f32.mxu0 0.0
    %1608 = vmatmul.mubr.f32.gmra.mrb[0].mxu0 %v1520
    %v1609 = vpop.f32.mrb[0].mxu0
    %v1610 = vadd.f32 %v1518, %v1609
    %v1611 = vpop.f32.mrb[0].mxu0
    %1612 = vmatprep.mubr.f32.mxu0 0.0
    %1613 = vmatmul.mubr.f32.gmra.mrb[0].mxu0 %v1523
    %v1614 = vpop.f32.mrb[0].mxu0
    %v1615 = vadd.f32 %v1518, %v1614
    %v1616 = vpop.f32.mrb[0].mxu0
    %1617 = vmatprep.mubr.f32.mxu0 0.0
    %1618 = vmatmul.mubr.f32.gmra.mrb[0].mxu0 %v1526
    %v1619 = vpop.f32.mrb[0].mxu0
    %v1620 = vadd.f32 %v1518, %v1619
    %v1621 = vpop.f32.mrb[0].mxu0
    %1622 = vmatprep.mubr.f32.mxu0 0.0
    %1623 = vmatmul.mubr.f32.gmra.mrb[0].mxu0 %v1529
    %v1624 = vpop.f32.mrb[0].mxu0
    %v1625 = vadd.f32 %v1518, %v1624
    %v1626 = vpop.f32.mrb[0].mxu0
    %1627 = vmatprep.mubr.f32.mxu0 0.0
    %1628 = vmatmul.mubr.f32.gmra.mrb[0].mxu0 %v1532
    %v1629 = vpop.f32.mrb[0].mxu0
    %v1630 = vadd.f32 %v1518, %v1629
    %v1631 = vpop.f32.mrb[0].mxu0
    %1632 = vmatprep.mubr.f32.mxu0 0.0
    %1633 = vmatmul.mubr.f32.gmra.mrb[0].mxu0 %v1535
    %v1634 = vpop.f32.mrb[0].mxu0
    %v1635 = vadd.f32 %v1518, %v1634
    %v1636 = vpop.f32.mrb[0].mxu0
    %1637 = vmatprep.mubr.f32.mxu0 0.0
    %1638 = vmatmul.mubr.f32.gmra.mrb[0].mxu0 %v1538
    %v1639 = vpop.f32.mrb[0].mxu0
    %v1640 = vadd.f32 %v1518, %v1639
    %v1641 = vpop.f32.mrb[0].mxu0
    %1642 = vmatprep.mubr.f32.mxu0 0.0
    %1643 = vmatmul.mubr.f32.gmra.mrb[0].mxu0 %v1541
    %v1644 = vpop.f32.mrb[0].mxu0
    %v1645 = vadd.f32 %v1518, %v1644
    %v1646 = vpop.f32.mrb[0].mxu0
    %1647 = vdwg.mxu0
    %1656 = vrot.lane.b32.xlu0 %v1610, 32
    %v1657 = vpop.permute.xlu0 %1656
    %1658 = vrot.lane.b32.xlu0 %v1615, 32
    %v1659 = vpop.permute.xlu0 %1658
    %1660 = vrot.lane.b32.xlu0 %v1620, 32
    %v1661 = vpop.permute.xlu0 %1660
    %1662 = vrot.lane.b32.xlu0 %v1625, 32
    %v1663 = vpop.permute.xlu0 %1662
    %1664 = vrot.lane.b32.xlu0 %v1630, 32
    %v1665 = vpop.permute.xlu0 %1664
    %1666 = vrot.lane.b32.xlu0 %v1635, 32
    %v1667 = vpop.permute.xlu0 %1666
    %1668 = vrot.lane.b32.xlu0 %v1640, 32
    %v1669 = vpop.permute.xlu0 %1668
    %1670 = vrot.lane.b32.xlu0 %v1645, 32
    %v1671 = vpop.permute.xlu0 %1670
    %v1680 = vadd.f32 %v958, %v1657
    %v1681 = vadd.f32 %v959, %v1659
    %v1682 = vadd.f32 %v960, %v1661
    %v1683 = vadd.f32 %v961, %v1663
    %v1684 = vadd.f32 %v962, %v1665
    %v1685 = vadd.f32 %v963, %v1667
    %v1686 = vadd.f32 %v964, %v1669
    %v1687 = vadd.f32 %v965, %v1671
    %v1688 = vmul.f32 %v1680, %v82
    %v1689 = vmul.f32 %v1681, %v87
    %v1690 = vmul.f32 %v1682, %v92
    %v1691 = vmul.f32 %v1683, %v97
    %v1692 = vmul.f32 %v1684, %v102
    %v1693 = vmul.f32 %v1685, %v107
    %v1694 = vmul.f32 %v1686, %v112
    %v1695 = vmul.f32 %v1687, %v117
    %v1696 = vld [vmem:[#allocation4 + $0x108] sm:$0xff]
    %v1697 = vld [vmem:[#allocation4 + $0x110] sm:$0xff]
    %v1698 = vld [vmem:[#allocation4 + $0x118] sm:$0xff]
    %v1699 = vld [vmem:[#allocation4 + $0x120] sm:$0xff]
    %v1700 = vld [vmem:[#allocation4 + $0x150] sm:$0x1]
    %v1701 = vlaneseq
    %v1702 = vshrl.u32 %v1701, 7
    %v1703 = vsub.s32 0, %v1702
    %v1704 = vrot.slane %v1700, %v1703
    %1713 = vrot.lane.b32.xlu0 %v1688, 96
    %v1714 = vpop.permute.xlu0 %1713
    %1715 = vrot.lane.b32.xlu0 %v1689, 96
    %v1716 = vpop.permute.xlu0 %1715
    %1717 = vrot.lane.b32.xlu0 %v1690, 96
    %v1718 = vpop.permute.xlu0 %1717
    %1719 = vrot.lane.b32.xlu0 %v1691, 96
    %v1720 = vpop.permute.xlu0 %1719
    %1721 = vrot.lane.b32.xlu0 %v1692, 96
    %v1722 = vpop.permute.xlu0 %1721
    %1723 = vrot.lane.b32.xlu0 %v1693, 96
    %v1724 = vpop.permute.xlu0 %1723
    %1725 = vrot.lane.b32.xlu0 %v1694, 96
    %v1726 = vpop.permute.xlu0 %1725
    %1727 = vrot.lane.b32.xlu0 %v1695, 96
    %v1728 = vpop.permute.xlu0 %1727
    %v1729 = vsel %vm290, %v1714, 0
    %v1731 = vsel %vm290, %v1716, 0
    %v1733 = vsel %vm290, %v1718, 0
    %v1735 = vsel %vm290, %v1720, 0
    %v1737 = vsel %vm290, %v1722, 0
    %v1739 = vsel %vm290, %v1724, 0
    %v1741 = vsel %vm290, %v1726, 0
    %v1743 = vsel %vm290, %v1728, 0
    %1745 = vmatprep.subr.mxu0 0.0
    %1746 = vmatpush1.msra.mxu0 %v1696
    %1747 = vmatprep.subr.mxu0 0.0
    %1748 = vmatpush1.msra.mxu0 %v1697
    %1749 = vmatprep.subr.mxu0 0.0
    %1750 = vmatpush1.msra.mxu0 %v1698
    %1751 = vmatprep.subr.mxu0 0.0
    %1752 = vmatpush1.msra.mxu0 %v1699
    %1753 = vmatprep.subr.mxu0 0.0
    %1754 = vmatpush1.msra.mxu0 0.0
    %1755 = vmatprep.subr.mxu0 0.0
    %1756 = vmatpush1.msra.mxu0 0.0
    %1757 = vmatprep.subr.mxu0 0.0
    %1758 = vmatpush1.msra.mxu0 0.0
    %1759 = vmatprep.subr.mxu0 0.0
    %1760 = vmatpush1.msra.mxu0 0.0
    %1761 = vmatprep.subr.mxu0 0.0
    %1762 = vmatpush1.msra.mxu0 0.0
    %1763 = vmatprep.subr.mxu0 0.0
    %1764 = vmatpush1.msra.mxu0 0.0
    %1765 = vmatprep.subr.mxu0 0.0
    %1766 = vmatpush1.msra.mxu0 0.0
    %1767 = vmatprep.subr.mxu0 0.0
    %1768 = vmatpush1.msra.mxu0 0.0
    %1769 = vmatprep.subr.mxu0 0.0
    %1770 = vmatpush1.msra.mxu0 0.0
    %1771 = vmatprep.subr.mxu0 0.0
    %1772 = vmatpush1.msra.mxu0 0.0
    %1773 = vmatprep.subr.mxu0 0.0
    %1774 = vmatpush1.msra.mxu0 0.0
    %1775 = vmatprep.subr.mxu0 0.0
    %1776 = vmatpush1.msra.mxu0 0.0
    %1777 = vmatprep.subr.mxu0 0.0
    %1778 = vmatpush1.msra.mxu0 0.0
    %1779 = vmatprep.subr.mxu0 0.0
    %1780 = vmatpush1.msra.mxu0 0.0
    %1781 = vmatprep.subr.mxu0 0.0
    %1782 = vmatpush1.msra.mxu0 0.0
    %1783 = vmatprep.subr.mxu0 0.0
    %1784 = vmatpush1.msra.mxu0 0.0
    %1785 = vmatprep.subr.mxu0 0.0
    %1786 = vmatpush1.msra.mxu0 0.0
    %1787 = vmatprep.subr.mxu0 0.0
    %1788 = vmatpush1.msra.mxu0 0.0
    %1789 = vmatprep.subr.mxu0 0.0
    %1790 = vmatpush1.msra.mxu0 0.0
    %1791 = vmatprep.subr.mxu0 0.0
    %1792 = vmatpush1.msra.mxu0 0.0
    %1793 = vmatprep.subr.mxu0 0.0
    %1794 = vmatpush1.msra.mxu0 0.0
    %1795 = vmatprep.subr.mxu0 0.0
    %1796 = vmatpush1.msra.mxu0 0.0
    %1797 = vmatprep.subr.mxu0 0.0
    %1798 = vmatpush1.msra.mxu0 0.0
    %1799 = vmatprep.subr.mxu0 0.0
    %1800 = vmatpush1.msra.mxu0 0.0
    %1801 = vmatprep.subr.mxu0 0.0
    %1802 = vmatpush1.msra.mxu0 0.0
    %1803 = vmatprep.subr.mxu0 0.0
    %1804 = vmatpush1.msra.mxu0 0.0
    %1805 = vmatprep.subr.mxu0 0.0
    %1806 = vmatpush1.msra.mxu0 0.0
    %1807 = vmatprep.subr.mxu0 0.0
    %1808 = vmatpush1.msra.mxu0 0.0
    %1809 = vmatprep.mubr.f32.mxu0 0.0
    %1810 = vmatmul.mubr.f32.gmra.mrb[0].mxu0 %v1729
    %v1811 = vpop.f32.mrb[0].mxu0
    %v1812 = vpop.f32.mrb[0].mxu0
    %1813 = vmatprep.mubr.f32.mxu0 0.0
    %1814 = vmatmul.mubr.f32.gmra.mrb[0].mxu0 %v1731
    %v1815 = vpop.f32.mrb[0].mxu0
    %v1816 = vadd.f32 %v1704, %v1815
    %v1817 = vpop.f32.mrb[0].mxu0
    %1818 = vmatprep.mubr.f32.mxu0 0.0
    %1819 = vmatmul.mubr.f32.gmra.mrb[0].mxu0 %v1733
    %v1820 = vpop.f32.mrb[0].mxu0
    %v1821 = vadd.f32 %v1704, %v1820
    %v1822 = vpop.f32.mrb[0].mxu0
    %1823 = vmatprep.mubr.f32.mxu0 0.0
    %1824 = vmatmul.mubr.f32.gmra.mrb[0].mxu0 %v1735
    %v1825 = vpop.f32.mrb[0].mxu0
    %v1826 = vpop.f32.mrb[0].mxu0
    %1827 = vmatprep.mubr.f32.mxu0 0.0
    %1828 = vmatmul.mubr.f32.gmra.mrb[0].mxu0 %v1737
    %v1829 = vpop.f32.mrb[0].mxu0
    %v1830 = vpop.f32.mrb[0].mxu0
    %1831 = vmatprep.mubr.f32.mxu0 0.0
    %1832 = vmatmul.mubr.f32.gmra.mrb[0].mxu0 %v1739
    %v1833 = vpop.f32.mrb[0].mxu0
    %v1834 = vadd.f32 %v1704, %v1833
    %v1835 = vpop.f32.mrb[0].mxu0
    %1836 = vmatprep.mubr.f32.mxu0 0.0
    %1837 = vmatmul.mubr.f32.gmra.mrb[0].mxu0 %v1741
    %v1838 = vpop.f32.mrb[0].mxu0
    %v1839 = vadd.f32 %v1704, %v1838
    %v1840 = vpop.f32.mrb[0].mxu0
    %1841 = vmatprep.mubr.f32.mxu0 0.0
    %1842 = vmatmul.mubr.f32.gmra.mrb[0].mxu0 %v1743
    %v1843 = vpop.f32.mrb[0].mxu0
    %v1844 = vpop.f32.mrb[0].mxu0
    %1845 = vdwg.mxu0
    %v1846 = vmul.f32 %v1816, %v87
    %v1847 = vmul.f32 %v1821, %v92
    %v1848 = vmul.f32 %v1834, %v107
    %v1849 = vmul.f32 %v1839, %v112
    %1850 = vst [vmem:[%s3] sm:$0xff] %v1846
    %1851 = vst [vmem:[%s3 + $0x8] sm:$0xff] %v1847
    %s1852 = scalar_lea.vmem %s3, 16
    %1853 = vst [vmem:[%s1852] sm:$0xff] %v1848
    %1854 = vst [vmem:[%s1852 + $0x8] sm:$0xff] %v1849
    // Predicated region
    $region14: #{ying_decoder_forward.1} parent=1 // pred_check
      _
    $region15: #{ying_decoder_forward.1} parent=1 // pred_check_branch
      %1856 = sbr.rel (0) target = $region17
    $region16: #{ying_decoder_forward.1} parent=1 // pred_region
      _
    $region17: #{ying_decoder_forward.1} parent=1 // pred_fallthru
      _
    // Predicated region
    $region18: #{ying_decoder_forward.1} parent=1 // pred_check
      _
    $region19: #{ying_decoder_forward.1} parent=1 // pred_check_branch
      %1858 = sbr.rel (0) target = $region21
    $region20: #{ying_decoder_forward.1} parent=1 // pred_region
      _
    $region21: #{ying_decoder_forward.1} parent=1 // pred_fallthru
      _
    %1859 = vsyncpa [#allocation5], 1

</llo_original>
